<compile_context>
chip_gen: v7x
topology: tpu7x:2x2x1
jax: 0.10.0
libtpu: 0.0.40
codegen_flags: <defaults>
</compile_context>

<pallas_src>
import functools

import jax
import jax.numpy as jnp
from jax.experimental import pallas as pl
from jax.experimental.pallas import tpu as pltpu

LN_EPS = 1e-5  # torch.nn.LayerNorm default


# --------------------------------------------------------------------------
# small helpers
# --------------------------------------------------------------------------
def _round_up(n: int, m: int) -> int:
    return ((n + m - 1) // m) * m


def _cdiv(a: int, b: int) -> int:
    return -(-a // b)


def _pad2(a, rows: int, cols: int):
    pr, pc = rows - a.shape[0], cols - a.shape[1]
    if pr or pc:
        a = jnp.pad(a, ((0, pr), (0, pc)))  # zero padding
    return a


@functools.lru_cache(maxsize=None)
def _tpu_defaults():
    """Per-generation tiling defaults (resolved once)."""
    kind = ""
    try:
        kind = jax.devices()[0].device_kind.lower()
    except Exception:
        pass
    if "v5" in kind and ("lite" in kind or "v5e" in kind):
        # v5e: single TensorCore, lower HBM BW -> bigger blocks, deeper x buffering.
        return {"x_buffering": 3, "target_block": 512, "min_steps": 2}
    if "7" in kind or ("v5" in kind):
        # v7x (2 TCs) / v5p (megacore): give each core >= 2 grid steps.
        return {"x_buffering": 2, "target_block": 256, "min_steps": 4}
    # v6e / unknown: single TensorCore.
    return {"x_buffering": 2, "target_block": 256, "min_steps": 2}


def _tiling(B: int, cfg):
    """Pick (block_b, n_steps) balanced to B so padding waste is ~8 rows/step."""
    n_steps = max(cfg["min_steps"], _cdiv(B, cfg["target_block"]))
    n_steps = max(1, min(n_steps, _cdiv(B, 8)))  # never create all-padding steps
    block_b = _round_up(_cdiv(B, n_steps), 8)
    return block_b, n_steps


def _copy_kernel(x_ref, o_ref):
    o_ref[...] = x_ref[...]


@functools.lru_cache(maxsize=None)
def _pipeline_mode_supported() -> bool:
    """One-time trial compile: does this Pallas accept pipeline_mode=pl.Buffered?"""
    if not hasattr(pl, "Buffered"):
        return False
    try:
        spec = pl.BlockSpec((8, 128), lambda i: (0, 0), pipeline_mode=pl.Buffered(1))
        call = pl.pallas_call(
            _copy_kernel,
            out_shape=jax.ShapeDtypeStruct((8, 128), jnp.float32),
            grid_spec=pltpu.PrefetchScalarGridSpec(
                num_scalar_prefetch=0,
                grid=(1,),
                in_specs=[spec],
                out_specs=pl.BlockSpec((8, 128), lambda i: (0, 0))),
        )
        jax.jit(call).lower(jax.ShapeDtypeStruct((8, 128), jnp.float32)).compile()
        return True
    except Exception:
        return False


def _vmem_limit_bytes(block_b, d_in, d_pad, n_pad, x_buffering,
                      single_buffer_weights) -> int:
    """Explicit scoped-VMEM request derived from the real footprint."""
    bf16, f32 = 2, 4
    w_bufs = 1 if single_buffer_weights else 2
    weights = w_bufs * bf16 * (d_in * d_pad + d_pad * d_pad + d_pad * n_pad)
    smalls = w_bufs * f32 * (8 * d_pad + 8 * n_pad)          # packed vecs + bo (8-sublane pad)
    x_bytes = x_buffering * f32 * block_b * d_in              # f32 x tiles
    out_bytes = 2 * f32 * block_b * n_pad                     # double-buffered output
    interm = 4 * f32 * block_b * d_pad                        # h / temporaries headroom
    est = weights + smalls + x_bytes + out_bytes + interm
    # Floor at the default scoped limit (32 MiB), cap below v7x's 64 MiB physical VMEM.
    return int(min(max(2 * est, 32 << 20), 56 << 20))


# --------------------------------------------------------------------------
# kernel
# --------------------------------------------------------------------------
def _fused_block(x_bf16, w_bf16, b, g, beta, inv_d):
    """bf16 (x @ W) with f32 accum, + b -> ReLU -> LayerNorm over true d_model."""
    h = jnp.dot(x_bf16, w_bf16, preferred_element_type=jnp.float32) + b
    h = jnp.maximum(h, 0.0)
    # One-pass statistics.  Padded lanes of h are exactly zero (their weight
    # columns / biases are zero-padded), so sums over the padded width equal
    # sums over the true feature width; divide by the true d_model (inv_d).
    s1 = jnp.sum(h, axis=-1, keepdims=True)
    s2 = jnp.sum(h * h, axis=-1, keepdims=True)
    mu = s1 * inv_d
    var = jnp.maximum(s2 * inv_d - mu * mu, 0.0)
    # gamma/beta are zero in padded lanes -> padded lanes stay exactly zero.
    return (h - mu) * jax.lax.rsqrt(var + LN_EPS) * g + beta


def cls_decoder_kernel(x_ref, w1_ref, w2_ref, wo_ref, vec_ref, bo_ref, o_ref,
                       *, inv_d):
    # vec_ref rows: 0=b1, 1=g1, 2=be1, 3=b2, 4=g2, 5=be2 (rows 6,7 unused).
    x = x_ref[...].astype(jnp.bfloat16)                      # in-kernel f32->bf16 cast
    h = _fused_block(x, w1_ref[...],
                     vec_ref[0:1, :], vec_ref[1:2, :], vec_ref[2:3, :], inv_d)
    h = _fused_block(h.astype(jnp.bfloat16), w2_ref[...],
                     vec_ref[3:4, :], vec_ref[4:5, :], vec_ref[5:6, :], inv_d)
    out = jnp.dot(h.astype(jnp.bfloat16), wo_ref[...],
                  preferred_element_type=jnp.float32) + bo_ref[...]
    o_ref[...] = out.astype(o_ref.dtype)                     # lane-dense [tb, n_pad]


def _build_call(*, inv_d, B_pad, d_in, d_pad, n_pad, block_b,
                x_buffering, single_buffer_weights, pipeline_mode_ok,
                vmem_limit_bytes, out_dtype):
    grid = (B_pad // block_b,)

    const_kw = {}
    if pipeline_mode_ok and single_buffer_weights:
        # Grid-invariant operands do not need double-buffering.
        const_kw = dict(pipeline_mode=pl.Buffered(1))
    x_kw = {}
    if pipeline_mode_ok and x_buffering != 2:
        x_kw = dict(pipeline_mode=pl.Buffered(x_buffering))

    def const(shape):
        return pl.BlockSpec(shape, lambda i: (0, 0), **const_kw)

    x_spec = pl.BlockSpec((block_b, d_in), lambda i: (i, 0), **x_kw)
    out_spec = pl.BlockSpec((block_b, n_pad), lambda i: (i, 0))

    return pl.pallas_call(
        functools.partial(cls_decoder_kernel, inv_d=inv_d),
        out_shape=jax.ShapeDtypeStruct((B_pad, n_pad), out_dtype),
        grid_spec=pltpu.PrefetchScalarGridSpec(
            num_scalar_prefetch=0,
            grid=grid,
            in_specs=[x_spec,
                      const((d_in, d_pad)),     # w1  (K unpadded = d_model)
                      const((d_pad, d_pad)),    # w2
                      const((d_pad, n_pad)),    # wo
                      const((8, d_pad)),        # packed b1,g1,be1,b2,g2,be2
                      const((1, n_pad))],       # bo
            out_specs=out_spec),
        compiler_params=pltpu.CompilerParams(
            dimension_semantics=("parallel",),
            vmem_limit_bytes=vmem_limit_bytes),
    )


@functools.partial(jax.jit, static_argnames=(
    "n_cls", "block_b", "n_steps", "x_buffering",
    "single_buffer_weights", "pipeline_mode_ok", "vmem_limit_bytes", "out_dtype"))
def _forward(x, w1, w2, wo, vecs, bo, *, n_cls, block_b, n_steps,
             x_buffering, single_buffer_weights, pipeline_mode_ok,
             vmem_limit_bytes, out_dtype):
    B, d_in = x.shape
    d_pad = w1.shape[1]
    n_pad = wo.shape[1]
    B_pad = block_b * n_steps
    if B_pad != B:
        x = jnp.pad(x, ((0, B_pad - B), (0, 0)))   # fused under this jit
    call = _build_call(inv_d=1.0 / float(d_in), B_pad=B_pad, d_in=d_in,
                       d_pad=d_pad, n_pad=n_pad, block_b=block_b,
                       x_buffering=x_buffering,
                       single_buffer_weights=single_buffer_weights,
                       pipeline_mode_ok=pipeline_mode_ok,
                       vmem_limit_bytes=vmem_limit_bytes,
                       out_dtype=out_dtype)
    out = call(x, w1, w2, wo, vecs, bo)
    return out[:B, :n_cls]                          # slice fuses under jit


# --------------------------------------------------------------------------
# public API
# --------------------------------------------------------------------------
def prepare_params(params):
    """One-time: pad + bf16-cast the weights, pack the small vectors.

    params: dict from init_params (f32).  Call once; reuse the result for
    every forward call (hoists all weight HBM passes out of the hot path).
    """
    d_model = params["w1"].shape[0]
    n_cls = params["wo"].shape[1]
    d_pad = _round_up(d_model, 128)
    n_pad = _round_up(n_cls, 128)

    w1 = _pad2(params["w1"], d_model, d_pad).astype(jnp.bfloat16)
    w2 = _pad2(params["w2"], d_pad, d_pad).astype(jnp.bfloat16)
    wo = _pad2(params["wo"], d_pad, n_pad).astype(jnp.bfloat16)

    vecs = jnp.zeros((8, d_pad), jnp.float32)
    vecs = vecs.at[0, :d_model].set(params["b1"].reshape(-1))
    vecs = vecs.at[1, :d_model].set(params["g1"].reshape(-1))
    vecs = vecs.at[2, :d_model].set(params["be1"].reshape(-1))
    vecs = vecs.at[3, :d_model].set(params["b2"].reshape(-1))
    vecs = vecs.at[4, :d_model].set(params["g2"].reshape(-1))
    vecs = vecs.at[5, :d_model].set(params["be2"].reshape(-1))

    bo = _pad2(params["bo"].reshape(1, -1), 1, n_pad)

    return dict(w1=w1, w2=w2, wo=wo, vecs=vecs, bo=bo,
                d_model=d_model, n_cls=n_cls)


def cls_decoder(x, prepared, *, block_b=None, x_buffering=None,
                out_dtype=jnp.float32):
    """x: [B, d_model] f32.  prepared: output of prepare_params().

    Returns [B, n_cls] (out_dtype), numerically matching the torch module up
    to bf16 matmul-operand rounding (accumulation is f32).
    """
    B, d_model = x.shape
    assert d_model == prepared["d_model"], "x feature dim mismatch"
    n_cls = prepared["n_cls"]
    d_pad = prepared["w1"].shape[1]
    n_pad = prepared["wo"].shape[1]

    cfg = _tpu_defaults()
    if block_b is None:
        blk, n_steps = _tiling(B, cfg)
    else:
        blk = max(8, _round_up(block_b, 8))
        n_steps = max(1, _cdiv(B, blk))

    xb = cfg["x_buffering"] if x_buffering is None else int(x_buffering)
    xb = max(2, min(xb, n_steps))           # never buffer deeper than the grid

    pipeline_mode_ok = _pipeline_mode_supported()
    single_buffer_weights = pipeline_mode_ok

    vmem_limit = _vmem_limit_bytes(blk, d_model, d_pad, n_pad, xb,
                                   single_buffer_weights)

    return _forward(x, prepared["w1"], prepared["w2"], prepared["wo"],
                    prepared["vecs"], prepared["bo"],
                    n_cls=n_cls, block_b=blk, n_steps=n_steps,
                    x_buffering=xb,
                    single_buffer_weights=single_buffer_weights,
                    pipeline_mode_ok=pipeline_mode_ok,
                    vmem_limit_bytes=vmem_limit,
                    out_dtype=out_dtype)


# --------------------------------------------------------------------------
# synthetic init + references
# --------------------------------------------------------------------------
def init_params(key, d_model, n_cls):
    """Deterministic synthetic init matching nn.Linear / nn.LayerNorm shapes."""
    ks = jax.random.split(key, 6)
    bound = 1.0 / (d_model ** 0.5)

    def lin(kw, kb, din, dout):
        # stored as [in, out] (== torch weight [out, in] transposed)
        w = jax.random.uniform(kw, (din, dout), jnp.float32, -bound, bound)
        b = jax.random.uniform(kb, (1, dout), jnp.float32, -bound, bound)
        return w, b

    w1, b1 = lin(ks[0], ks[1], d_model, d_model)
    w2, b2 = lin(ks[2], ks[3], d_model, d_model)
    wo, bo = lin(ks[4], ks[5], d_model, n_cls)
    ones = jnp.ones((1, d_model), jnp.float32)
    zeros = jnp.zeros((1, d_model), jnp.float32)
    return dict(w1=w1, b1=b1, g1=ones, be1=zeros,
                w2=w2, b2=b2, g2=ones, be2=zeros,
                wo=wo, bo=bo)


def reference_f32(x, p):
    """Pure-f32 JAX reference mirroring the PyTorch forward exactly."""
    def block(x, w, b, g, be):
        h = jnp.maximum(x @ w + b, 0.0)
        mu = jnp.mean(h, -1, keepdims=True)
        var = jnp.mean((h - mu) ** 2, -1, keepdims=True)
        return (h - mu) / jnp.sqrt(var + LN_EPS) * g + be
    x = block(x, p["w1"], p["b1"], p["g1"], p["be1"])
    x = block(x, p["w2"], p["b2"], p["g2"], p["be2"])
    return x @ p["wo"] + p["bo"]


def reference_bf16(x, p):
    """Reference with the same bf16-operand / f32-accum numerics as the kernel."""
    def c(a):
        return a.astype(jnp.bfloat16)

    def block(x, w, b, g, be):
        h = jnp.dot(c(x), c(w), preferred_element_type=jnp.float32) + b
        h = jnp.maximum(h, 0.0)
        mu = jnp.mean(h, -1, keepdims=True)
        var = jnp.maximum(jnp.mean(h * h, -1, keepdims=True) - mu * mu, 0.0)
        return (h - mu) * jax.lax.rsqrt(var + LN_EPS) * g + be

    x = block(x, p["w1"], p["b1"], p["g1"], p["be1"])
    x = block(x, p["w2"], p["b2"], p["g2"], p["be2"])
    return jnp.dot(c(x), c(p["wo"]), preferred_element_type=jnp.float32) + p["bo"]


if __name__ == "__main__":
    # Small but pipeline-exercising shapes: several grid steps over 512 rows,
    # hidden dim padded 64->128 and classifier padded 10->128 once at prepare
    # time (x itself is never padded along the feature dim).
    d_model, n_cls, batch = 64, 10, 512
    key = jax.random.PRNGKey(0)
    kx, kp = jax.random.split(key)
    x = jax.random.normal(kx, (batch, d_model), jnp.float32)
    params = init_params(kp, d_model, n_cls)

    prepared = prepare_params(params)        # one-time weight pad/cast/pack

    out = cls_decoder(x, prepared)
    out = jax.block_until_ready(out)         # only here, not in the hot path
    assert out.shape == (batch, n_cls)

    # Tight check against a reference with identical bf16-operand numerics.
    ref_b = reference_bf16(x, params)
    err_b = float(jnp.max(jnp.abs(out - ref_b)))
    assert jnp.allclose(out, ref_b, atol=1e-3, rtol=1e-3), f"bf16-ref max err {err_b}"

    # Loose check against the pure-f32 (PyTorch-equivalent) reference;
    # deviation comes only from bf16 rounding of matmul operands.
    ref_f = reference_f32(x, params)
    err_f = float(jnp.max(jnp.abs(out - ref_f)))
    assert jnp.allclose(out, ref_f, atol=3e-2, rtol=3e-2), f"f32-ref max err {err_f}"

    print("KERNEL_OK")
</pallas_src>

<mosaic_0001>
module attributes {stable_mosaic.version = 11 : i64} {
  func.func @cls_decoder_kernel(%arg0: i32, %arg1: memref<256x64xf32, #tpu.memory_space<vmem>>, %arg2: memref<64x128xbf16, #tpu.memory_space<vmem>>, %arg3: memref<128x128xbf16, #tpu.memory_space<vmem>>, %arg4: memref<128x128xbf16, #tpu.memory_space<vmem>>, %arg5: memref<8x128xf32, #tpu.memory_space<vmem>>, %arg6: memref<1x128xf32, #tpu.memory_space<vmem>>, %arg7: memref<256x128xf32, #tpu.memory_space<vmem>>) attributes {dimension_semantics = [#tpu.dimension_semantics<parallel>], iteration_bounds = array<i64: 2>, scalar_prefetch = 0 : i64, scratch_operands = 0 : i64, tpu.core_type = #tpu.core_type<tc>, window_params = [{transform_indices = @transform_0, window_bounds = array<i64: 256, 64>}, {pipeline_mode = #tpu.pipeline_mode<synchronous>, transform_indices = @transform_1, window_bounds = array<i64: 64, 128>}, {pipeline_mode = #tpu.pipeline_mode<synchronous>, transform_indices = @transform_2, window_bounds = array<i64: 128, 128>}, {pipeline_mode = #tpu.pipeline_mode<synchronous>, transform_indices = @transform_3, window_bounds = array<i64: 128, 128>}, {pipeline_mode = #tpu.pipeline_mode<synchronous>, transform_indices = @transform_4, window_bounds = array<i64: 8, 128>}, {pipeline_mode = #tpu.pipeline_mode<synchronous>, transform_indices = @transform_5, window_bounds = array<i64: 1, 128>}, {transform_indices = @transform_6, window_bounds = array<i64: 256, 128>}]} {
    %c0 = arith.constant 0 : index
    %c0_0 = arith.constant 0 : index
    %0 = vector.load %arg1[%c0, %c0_0] : memref<256x64xf32, #tpu.memory_space<vmem>>, vector<256x64xf32>
    %1 = arith.truncf %0 : vector<256x64xf32> to vector<256x64xbf16>
    %c0_1 = arith.constant 0 : index
    %c0_2 = arith.constant 0 : index
    %2 = vector.load %arg2[%c0_1, %c0_2] : memref<64x128xbf16, #tpu.memory_space<vmem>>, vector<64x128xbf16>
    %c0_3 = arith.constant 0 : index
    %c0_4 = arith.constant 0 : index
    %3 = vector.load %arg5[%c0_3, %c0_4] : memref<8x128xf32, #tpu.memory_space<vmem>>, vector<1x128xf32>
    %c1 = arith.constant 1 : index
    %c0_5 = arith.constant 0 : index
    %4 = vector.load %arg5[%c1, %c0_5] : memref<8x128xf32, #tpu.memory_space<vmem>>, vector<1x128xf32>
    %c2 = arith.constant 2 : index
    %c0_6 = arith.constant 0 : index
    %5 = vector.load %arg5[%c2, %c0_6] : memref<8x128xf32, #tpu.memory_space<vmem>>, vector<1x128xf32>
    %cst = arith.constant dense<0.000000e+00> : vector<256x128xf32>
    %6 = tpu.matmul %1, %2, %cst {dimension_numbers = #tpu.dot_dimension_numbers<[1], [0], [0], [1], [0, 0, 1, 1], [], []>} : vector<256x64xbf16>, vector<64x128xbf16>, vector<256x128xf32> -> vector<256x128xf32>
    %7 = vector.broadcast %3 : vector<1x128xf32> to vector<256x128xf32>
    %8 = arith.addf %6, %7 : vector<256x128xf32>
    %cst_7 = arith.constant 0.000000e+00 : f32
    %9 = vector.broadcast %cst_7 : f32 to vector<256x128xf32>
    %10 = arith.maximumf %8, %9 : vector<256x128xf32>
    %cst_8 = arith.constant dense<0.000000e+00> : vector<256xf32>
    %11 = vector.multi_reduction <add>, %10, %cst_8 [1] : vector<256x128xf32> to vector<256xf32>
    %12 = vector.shape_cast %11 : vector<256xf32> to vector<256x1xf32>
    %13 = arith.mulf %10, %10 : vector<256x128xf32>
    %cst_9 = arith.constant dense<0.000000e+00> : vector<256xf32>
    %14 = vector.multi_reduction <add>, %13, %cst_9 [1] : vector<256x128xf32> to vector<256xf32>
    %15 = vector.shape_cast %14 : vector<256xf32> to vector<256x1xf32>
    %cst_10 = arith.constant 1.562500e-02 : f32
    %16 = vector.broadcast %cst_10 : f32 to vector<256x1xf32>
    %17 = arith.mulf %12, %16 : vector<256x1xf32>
    %cst_11 = arith.constant 1.562500e-02 : f32
    %18 = vector.broadcast %cst_11 : f32 to vector<256x1xf32>
    %19 = arith.mulf %15, %18 : vector<256x1xf32>
    %20 = arith.mulf %17, %17 : vector<256x1xf32>
    %21 = arith.subf %19, %20 : vector<256x1xf32>
    %cst_12 = arith.constant 0.000000e+00 : f32
    %22 = vector.broadcast %cst_12 : f32 to vector<256x1xf32>
    %23 = arith.maximumf %21, %22 : vector<256x1xf32>
    %24 = vector.broadcast %17 : vector<256x1xf32> to vector<256x128xf32>
    %25 = arith.subf %10, %24 : vector<256x128xf32>
    %cst_13 = arith.constant 9.99999974E-6 : f32
    %26 = vector.broadcast %cst_13 : f32 to vector<256x1xf32>
    %27 = arith.addf %23, %26 : vector<256x1xf32>
    %28 = math.rsqrt %27 : vector<256x1xf32>
    %29 = vector.broadcast %28 : vector<256x1xf32> to vector<256x128xf32>
    %30 = arith.mulf %25, %29 : vector<256x128xf32>
    %31 = vector.broadcast %4 : vector<1x128xf32> to vector<256x128xf32>
    %32 = arith.mulf %30, %31 : vector<256x128xf32>
    %33 = vector.broadcast %5 : vector<1x128xf32> to vector<256x128xf32>
    %34 = arith.addf %32, %33 : vector<256x128xf32>
    %35 = arith.truncf %34 : vector<256x128xf32> to vector<256x128xbf16>
    %c0_14 = arith.constant 0 : index
    %c0_15 = arith.constant 0 : index
    %36 = vector.load %arg3[%c0_14, %c0_15] : memref<128x128xbf16, #tpu.memory_space<vmem>>, vector<128x128xbf16>
    %c3 = arith.constant 3 : index
    %c0_16 = arith.constant 0 : index
    %37 = vector.load %arg5[%c3, %c0_16] : memref<8x128xf32, #tpu.memory_space<vmem>>, vector<1x128xf32>
    %c4 = arith.constant 4 : index
    %c0_17 = arith.constant 0 : index
    %38 = vector.load %arg5[%c4, %c0_17] : memref<8x128xf32, #tpu.memory_space<vmem>>, vector<1x128xf32>
    %c5 = arith.constant 5 : index
    %c0_18 = arith.constant 0 : index
    %39 = vector.load %arg5[%c5, %c0_18] : memref<8x128xf32, #tpu.memory_space<vmem>>, vector<1x128xf32>
    %cst_19 = arith.constant dense<0.000000e+00> : vector<256x128xf32>
    %40 = tpu.matmul %35, %36, %cst_19 {dimension_numbers = #tpu.dot_dimension_numbers<[1], [0], [0], [1], [0, 0, 1, 1], [], []>} : vector<256x128xbf16>, vector<128x128xbf16>, vector<256x128xf32> -> vector<256x128xf32>
    %41 = vector.broadcast %37 : vector<1x128xf32> to vector<256x128xf32>
    %42 = arith.addf %40, %41 : vector<256x128xf32>
    %cst_20 = arith.constant 0.000000e+00 : f32
    %43 = vector.broadcast %cst_20 : f32 to vector<256x128xf32>
    %44 = arith.maximumf %42, %43 : vector<256x128xf32>
    %cst_21 = arith.constant dense<0.000000e+00> : vector<256xf32>
    %45 = vector.multi_reduction <add>, %44, %cst_21 [1] : vector<256x128xf32> to vector<256xf32>
    %46 = vector.shape_cast %45 : vector<256xf32> to vector<256x1xf32>
    %47 = arith.mulf %44, %44 : vector<256x128xf32>
    %cst_22 = arith.constant dense<0.000000e+00> : vector<256xf32>
    %48 = vector.multi_reduction <add>, %47, %cst_22 [1] : vector<256x128xf32> to vector<256xf32>
    %49 = vector.shape_cast %48 : vector<256xf32> to vector<256x1xf32>
    %cst_23 = arith.constant 1.562500e-02 : f32
    %50 = vector.broadcast %cst_23 : f32 to vector<256x1xf32>
    %51 = arith.mulf %46, %50 : vector<256x1xf32>
    %cst_24 = arith.constant 1.562500e-02 : f32
    %52 = vector.broadcast %cst_24 : f32 to vector<256x1xf32>
    %53 = arith.mulf %49, %52 : vector<256x1xf32>
    %54 = arith.mulf %51, %51 : vector<256x1xf32>
    %55 = arith.subf %53, %54 : vector<256x1xf32>
    %cst_25 = arith.constant 0.000000e+00 : f32
    %56 = vector.broadcast %cst_25 : f32 to vector<256x1xf32>
    %57 = arith.maximumf %55, %56 : vector<256x1xf32>
    %58 = vector.broadcast %51 : vector<256x1xf32> to vector<256x128xf32>
    %59 = arith.subf %44, %58 : vector<256x128xf32>
    %cst_26 = arith.constant 9.99999974E-6 : f32
    %60 = vector.broadcast %cst_26 : f32 to vector<256x1xf32>
    %61 = arith.addf %57, %60 : vector<256x1xf32>
    %62 = math.rsqrt %61 : vector<256x1xf32>
    %63 = vector.broadcast %62 : vector<256x1xf32> to vector<256x128xf32>
    %64 = arith.mulf %59, %63 : vector<256x128xf32>
    %65 = vector.broadcast %38 : vector<1x128xf32> to vector<256x128xf32>
    %66 = arith.mulf %64, %65 : vector<256x128xf32>
    %67 = vector.broadcast %39 : vector<1x128xf32> to vector<256x128xf32>
    %68 = arith.addf %66, %67 : vector<256x128xf32>
    %69 = arith.truncf %68 : vector<256x128xf32> to vector<256x128xbf16>
    %c0_27 = arith.constant 0 : index
    %c0_28 = arith.constant 0 : index
    %70 = vector.load %arg4[%c0_27, %c0_28] : memref<128x128xbf16, #tpu.memory_space<vmem>>, vector<128x128xbf16>
    %cst_29 = arith.constant dense<0.000000e+00> : vector<256x128xf32>
    %71 = tpu.matmul %69, %70, %cst_29 {dimension_numbers = #tpu.dot_dimension_numbers<[1], [0], [0], [1], [0, 0, 1, 1], [], []>} : vector<256x128xbf16>, vector<128x128xbf16>, vector<256x128xf32> -> vector<256x128xf32>
    %c0_30 = arith.constant 0 : index
    %c0_31 = arith.constant 0 : index
    %72 = vector.load %arg6[%c0_30, %c0_31] : memref<1x128xf32, #tpu.memory_space<vmem>>, vector<1x128xf32>
    %73 = vector.broadcast %72 : vector<1x128xf32> to vector<256x128xf32>
    %74 = arith.addf %71, %73 : vector<256x128xf32>
    %c0_32 = arith.constant 0 : index
    %c0_33 = arith.constant 0 : index
    %75 = vector.load %arg7[%c0_32, %c0_33] : memref<256x128xf32, #tpu.memory_space<vmem>>, vector<256x128xf32>
    tpu.vector_store %arg7[%c0_32, %c0_33], %74 {strides = array<i32>} : memref<256x128xf32, #tpu.memory_space<vmem>>, vector<256x128xf32>,
    return
  }
  func.func @transform_0(%arg0: i32) -> (i32, i32) {
    %c0_i32 = arith.constant 0 : i32
    %c0_i32_0 = arith.constant 0 : i32
    return %arg0, %c0_i32 : i32, i32
  }
  func.func @transform_1(%arg0: i32) -> (i32, i32) {
    %c0_i32 = arith.constant 0 : i32
    %c0_i32_0 = arith.constant 0 : i32
    %c0_i32_1 = arith.constant 0 : i32
    return %c0_i32, %c0_i32_0 : i32, i32
  }
  func.func @transform_2(%arg0: i32) -> (i32, i32) {
    %c0_i32 = arith.constant 0 : i32
    %c0_i32_0 = arith.constant 0 : i32
    %c0_i32_1 = arith.constant 0 : i32
    return %c0_i32, %c0_i32_0 : i32, i32
  }
  func.func @transform_3(%arg0: i32) -> (i32, i32) {
    %c0_i32 = arith.constant 0 : i32
    %c0_i32_0 = arith.constant 0 : i32
    %c0_i32_1 = arith.constant 0 : i32
    return %c0_i32, %c0_i32_0 : i32, i32
  }
  func.func @transform_4(%arg0: i32) -> (i32, i32) {
    %c0_i32 = arith.constant 0 : i32
    %c0_i32_0 = arith.constant 0 : i32
    %c0_i32_1 = arith.constant 0 : i32
    return %c0_i32, %c0_i32_0 : i32, i32
  }
  func.func @transform_5(%arg0: i32) -> (i32, i32) {
    %c0_i32 = arith.constant 0 : i32
    %c0_i32_0 = arith.constant 0 : i32
    %c0_i32_1 = arith.constant 0 : i32
    return %c0_i32, %c0_i32_0 : i32, i32
  }
  func.func @transform_6(%arg0: i32) -> (i32, i32) {
    %c0_i32 = arith.constant 0 : i32
    %c0_i32_0 = arith.constant 0 : i32
    return %arg0, %c0_i32 : i32, i32
  }
}

</mosaic_0001>

<llo_original>
// kernel: _forward.1
$region0: #{_forward.1}
  #allocation0 [shape = 'u32[]', space=smem, size = 0x4, offset = 0x4, fixed_abs, tag = 'smem constant byte address 0x4 - core index']
  #allocation1 [shape = 'u32[144,128]{1,0:T(1,128)}', space=vmem, size = 0x12000, scoped, tag = 'internal scratch']
  %s0 = inlined_call_operand.vmem [shape: f32[512,64], index: 0, kind: input, shape index: {}]
  %s1 = inlined_call_operand.vmem [shape: bf16[64,128], index: 1, kind: input, shape index: {}]
  %s2 = inlined_call_operand.vmem [shape: bf16[128,128], index: 2, kind: input, shape index: {}]
  %s3 = inlined_call_operand.vmem [shape: bf16[128,128], index: 3, kind: input, shape index: {}]
  %s4 = inlined_call_operand.vmem [shape: f32[8,128], index: 4, kind: input, shape index: {}]
  %s5 = inlined_call_operand.vmem [shape: f32[1,128], index: 5, kind: input, shape index: {}]
  %s6 = inlined_call_operand.vmem [shape: f32[512,128], index: 6, kind: output, shape index: {}]
  %s7 = sld [smem:[#allocation0]]
  $region57: #{_forward.1} parent=0
    _
  %s9 = ssub.s32 1, %s7
  %s10 = scalar_select 0, %s9, %s7
  loop: start=0, step=1, limit=4
  $region2: #{_forward.1} parent=0 // loop_pre_header
    _
  $region3: #{_forward.1} parent=0 // loop_header
    %s12 = sphi 0, %s16
    %p13 = scmp.ge.s32.totalorder %s12, 4
    %s22 = sphi 0, %s24
    %s25 = sphi 0, %s22
    %s26 = sphi 0, %s25
    %s42 = sphi 0, %s26
    %s46 = sphi 0, %s46
    %s48 = sphi 0, %s46
    %s49 = sphi 0, %s48
    %s63 = sphi 0, %s49
    %s67 = sphi 0, %s67
    %s69 = sphi 0, %s67
    %s70 = sphi 0, %s69
    %s84 = sphi 0, %s70
    %s88 = sphi 0, %s88
    %s90 = sphi 0, %s88
    %s91 = sphi 0, %s90
    %s105 = sphi 0, %s91
    %s109 = sphi 0, %s109
    %s111 = sphi 0, %s109
    %s112 = sphi 0, %s111
    %s126 = sphi 0, %s112
    %s130 = sphi 0, %s130
    %s132 = sphi 0, %s130
    %s133 = sphi 0, %s132
    %s147 = sphi 0, %s133
    %s153 = sphi 0, %s155
    %s156 = sphi 0, %s153
    %s157 = sphi 0, %s156
    %s173 = sphi 0, %s157
  $region4: #{_forward.1} parent=0 // loop_header_branch
    %15 = sbr.rel (%p13) target = $region8
  $region5: #{_forward.1} parent=0 // loop_body
    %s17 = ssub.s32 %s12, 1
    %s18 = ssub.s32 %s12, 2
    %s19 = sadd.s32 %s12, 1
    %s20 = ssub.s32 %s12, %s19
    %p21 = scmp.eq.s32.totalorder %s20, 0
    %s23 = sadd.s32 %s22, 1
    %s24 = scalar_select %p21, %s22, %s23
    %p27 = pneg %p21
    %p28 = scmp.eq.s32.totalorder %s12, 1
    %p29 = por %p27, %p28
    %p30 = scmp.ne.s32.totalorder %s22, %s25
    %p31 = scmp.eq.s32.totalorder %s12, 0
    %p32 = por %p30, %p31
    %p33 = scmp.ne.s32.totalorder %s22, %s25
    %p34 = scmp.eq.s32.totalorder %s17, 1
    %p35 = por %p33, %p34
    %p36 = scmp.ne.s32.totalorder %s25, %s26
    %p37 = scmp.eq.s32.totalorder %s17, 0
    %p38 = por %p36, %p37
    %p39 = scmp.ne.s32.totalorder %s25, %s26
    %p40 = scmp.eq.s32.totalorder %s18, 1
    %p41 = por %p39, %p40
    %p43 = scmp.ne.s32.totalorder %s26, %s42
    %p44 = scmp.eq.s32.totalorder %s18, 0
    %p45 = por %p43, %p44
    %s47 = sadd.s32 %s46, 1
    %p50 = scmp.eq.s32.totalorder %s12, 1
    %p51 = scmp.ne.s32.totalorder %s46, %s48
    %p52 = scmp.eq.s32.totalorder %s12, 0
    %p53 = por %p51, %p52
    %p54 = scmp.ne.s32.totalorder %s46, %s48
    %p55 = scmp.eq.s32.totalorder %s17, 1
    %p56 = por %p54, %p55
    %p57 = scmp.ne.s32.totalorder %s48, %s49
    %p58 = scmp.eq.s32.totalorder %s17, 0
    %p59 = por %p57, %p58
    %p60 = scmp.ne.s32.totalorder %s48, %s49
    %p61 = scmp.eq.s32.totalorder %s18, 1
    %p62 = por %p60, %p61
    %p64 = scmp.ne.s32.totalorder %s49, %s63
    %p65 = scmp.eq.s32.totalorder %s18, 0
    %p66 = por %p64, %p65
    %s68 = sadd.s32 %s67, 1
    %p71 = scmp.eq.s32.totalorder %s12, 1
    %p72 = scmp.ne.s32.totalorder %s67, %s69
    %p73 = scmp.eq.s32.totalorder %s12, 0
    %p74 = por %p72, %p73
    %p75 = scmp.ne.s32.totalorder %s67, %s69
    %p76 = scmp.eq.s32.totalorder %s17, 1
    %p77 = por %p75, %p76
    %p78 = scmp.ne.s32.totalorder %s69, %s70
    %p79 = scmp.eq.s32.totalorder %s17, 0
    %p80 = por %p78, %p79
    %p81 = scmp.ne.s32.totalorder %s69, %s70
    %p82 = scmp.eq.s32.totalorder %s18, 1
    %p83 = por %p81, %p82
    %p85 = scmp.ne.s32.totalorder %s70, %s84
    %p86 = scmp.eq.s32.totalorder %s18, 0
    %p87 = por %p85, %p86
    %s89 = sadd.s32 %s88, 1
    %p92 = scmp.eq.s32.totalorder %s12, 1
    %p93 = scmp.ne.s32.totalorder %s88, %s90
    %p94 = scmp.eq.s32.totalorder %s12, 0
    %p95 = por %p93, %p94
    %p96 = scmp.ne.s32.totalorder %s88, %s90
    %p97 = scmp.eq.s32.totalorder %s17, 1
    %p98 = por %p96, %p97
    %p99 = scmp.ne.s32.totalorder %s90, %s91
    %p100 = scmp.eq.s32.totalorder %s17, 0
    %p101 = por %p99, %p100
    %p102 = scmp.ne.s32.totalorder %s90, %s91
    %p103 = scmp.eq.s32.totalorder %s18, 1
    %p104 = por %p102, %p103
    %p106 = scmp.ne.s32.totalorder %s91, %s105
    %p107 = scmp.eq.s32.totalorder %s18, 0
    %p108 = por %p106, %p107
    %s110 = sadd.s32 %s109, 1
    %p113 = scmp.eq.s32.totalorder %s12, 1
    %p114 = scmp.ne.s32.totalorder %s109, %s111
    %p115 = scmp.eq.s32.totalorder %s12, 0
    %p116 = por %p114, %p115
    %p117 = scmp.ne.s32.totalorder %s109, %s111
    %p118 = scmp.eq.s32.totalorder %s17, 1
    %p119 = por %p117, %p118
    %p120 = scmp.ne.s32.totalorder %s111, %s112
    %p121 = scmp.eq.s32.totalorder %s17, 0
    %p122 = por %p120, %p121
    %p123 = scmp.ne.s32.totalorder %s111, %s112
    %p124 = scmp.eq.s32.totalorder %s18, 1
    %p125 = por %p123, %p124
    %p127 = scmp.ne.s32.totalorder %s112, %s126
    %p128 = scmp.eq.s32.totalorder %s18, 0
    %p129 = por %p127, %p128
    %s131 = sadd.s32 %s130, 1
    %p134 = scmp.eq.s32.totalorder %s12, 1
    %p135 = scmp.ne.s32.totalorder %s130, %s132
    %p136 = scmp.eq.s32.totalorder %s12, 0
    %p137 = por %p135, %p136
    %p138 = scmp.ne.s32.totalorder %s130, %s132
    %p139 = scmp.eq.s32.totalorder %s17, 1
    %p140 = por %p138, %p139
    %p141 = scmp.ne.s32.totalorder %s132, %s133
    %p142 = scmp.eq.s32.totalorder %s17, 0
    %p143 = por %p141, %p142
    %p144 = scmp.ne.s32.totalorder %s132, %s133
    %p145 = scmp.eq.s32.totalorder %s18, 1
    %p146 = por %p144, %p145
    %p148 = scmp.ne.s32.totalorder %s133, %s147
    %p149 = scmp.eq.s32.totalorder %s18, 0
    %p150 = por %p148, %p149
    %s151 = ssub.s32 %s12, %s19
    %p152 = scmp.eq.s32.totalorder %s151, 0
    %s154 = sadd.s32 %s153, 1
    %s155 = scalar_select %p152, %s153, %s154
    %p158 = pneg %p152
    %p159 = scmp.eq.s32.totalorder %s12, 1
    %p160 = por %p158, %p159
    %p161 = scmp.ne.s32.totalorder %s153, %s156
    %p162 = scmp.eq.s32.totalorder %s12, 0
    %p163 = por %p161, %p162
    %p164 = scmp.ne.s32.totalorder %s153, %s156
    %p165 = scmp.eq.s32.totalorder %s17, 1
    %p166 = por %p164, %p165
    %p167 = scmp.ne.s32.totalorder %s156, %s157
    %p168 = scmp.eq.s32.totalorder %s17, 0
    %p169 = por %p167, %p168
    %p170 = scmp.ne.s32.totalorder %s156, %s157
    %p171 = scmp.eq.s32.totalorder %s18, 1
    %p172 = por %p170, %p171
    %p174 = scmp.ne.s32.totalorder %s157, %s173
    %p175 = scmp.eq.s32.totalorder %s18, 0
    %p176 = por %p174, %p175
    %p177 = scmp.le.s32.totalorder 1, %s12
    %p178 = scmp.lt.s32.totalorder %s12, 3
    %p179 = pnand %p177, %p178
    %p180 = pneg %p179
    // Predicated region
    $region9: #{_forward.1} parent=5 // pred_check
      _
    $region10: #{_forward.1} parent=5 // pred_check_branch
      %182 = sbr.rel (%p179) target = $region12
    $region11: #{_forward.1} parent=5 // pred_region
      %s183 = ssub.s32 %s12, 1
      // Predicated region
      $region13: #{_forward.1} parent=11 // pred_check
        %p184 = pneg %p59
      $region14: #{_forward.1} parent=11 // pred_check_branch
        %186 = sbr.rel (%p184) target = $region16
      $region15: #{_forward.1} parent=11 // pred_region
        _
      $region16: #{_forward.1} parent=11 // pred_fallthru
        _
      // Predicated region
      $region17: #{_forward.1} parent=11 // pred_check
        %p187 = pneg %p80
      $region18: #{_forward.1} parent=11 // pred_check_branch
        %189 = sbr.rel (%p187) target = $region20
      $region19: #{_forward.1} parent=11 // pred_region
        _
      $region20: #{_forward.1} parent=11 // pred_fallthru
        _
      // Predicated region
      $region21: #{_forward.1} parent=11 // pred_check
        %p190 = pneg %p101
      $region22: #{_forward.1} parent=11 // pred_check_branch
        %192 = sbr.rel (%p190) target = $region24
      $region23: #{_forward.1} parent=11 // pred_region
        _
      $region24: #{_forward.1} parent=11 // pred_fallthru
        _
      // Predicated region
      $region25: #{_forward.1} parent=11 // pred_check
        %p193 = pneg %p122
      $region26: #{_forward.1} parent=11 // pred_check_branch
        %195 = sbr.rel (%p193) target = $region28
      $region27: #{_forward.1} parent=11 // pred_region
        _
      $region28: #{_forward.1} parent=11 // pred_fallthru
        _
      // Predicated region
      $region29: #{_forward.1} parent=11 // pred_check
        %p196 = pneg %p143
      $region30: #{_forward.1} parent=11 // pred_check_branch
        %198 = sbr.rel (%p196) target = $region32
      $region31: #{_forward.1} parent=11 // pred_region
        _
      $region32: #{_forward.1} parent=11 // pred_fallthru
        _
    $region12: #{_forward.1} parent=5 // pred_fallthru
      _
    %p199 = scmp.lt.s32.totalorder %s12, 2
    // Predicated region
    $region33: #{_forward.1} parent=5 // pred_check
      %p200 = pneg %p199
    $region34: #{_forward.1} parent=5 // pred_check_branch
      %202 = sbr.rel (%p200) target = $region36
    $region35: #{_forward.1} parent=5 // pred_region
      // Predicated region
      $region37: #{_forward.1} parent=35 // pred_check
        %p203 = pneg %p32
      $region38: #{_forward.1} parent=35 // pred_check_branch
        %205 = sbr.rel (%p203) target = $region40
      $region39: #{_forward.1} parent=35 // pred_region
        %s206 = smul.u32 32, %s12
        %p207 = scmp.lt.s32.totalorder %s206, 63
        %s208 = scalar_select %p207, %s206, 63
        %s209 = smul.addr %s208, 8
        %s210 = scalar_lea.vmem %s0, %s209
        %s211 = smul.u32 32, %s12
      $region40: #{_forward.1} parent=35 // pred_fallthru
        _
    $region36: #{_forward.1} parent=5 // pred_fallthru
      _
    %p212 = scmp.le.s32.totalorder 1, %s12
    %p213 = scmp.lt.s32.totalorder %s12, 3
    %p214 = pnand %p212, %p213
    %p215 = pneg %p214
    // Predicated region
    $region41: #{_forward.1} parent=5 // pred_check
      _
    $region42: #{_forward.1} parent=5 // pred_check_branch
      %217 = sbr.rel (%p214) target = $region44
    $region43: #{_forward.1} parent=5 // pred_region
      %s218 = ssub.s32 %s12, 1
      %s219 = smul.u32 32, %s17
      %p220 = scmp.lt.s32.totalorder %s219, 63
      %s221 = scalar_select %p220, %s219, 63
      %s222 = smul.addr %s221, 8
      %s223 = scalar_lea.vmem %s0, %s222
      %p224 = pneg %p38
      %p225 = pneg %p35
      %p226 = pneg %p59
      %p227 = pneg %p56
      %p228 = pneg %p80
      %p229 = pneg %p77
      %p230 = pneg %p101
      %p231 = pneg %p98
      %p232 = pneg %p122
      %p233 = pneg %p119
      %p234 = pneg %p143
      %p235 = pneg %p140
      %p236 = pneg %p169
      %p237 = pneg %p166
      %s238 = smul.u32 32, %s17
      %p239 = scmp.lt.s32.totalorder %s238, 63
      %s240 = scalar_select %p239, %s238, 63
      %s241 = smul.addr %s240, 8
      %s242 = scalar_lea.vmem %s6, %s241
      %s243 = smul.u32 32, %s17
      %p244 = scmp.lt.s32.totalorder %s243, 63
      %s245 = scalar_select %p244, %s243, 63
      %s246 = smul.addr %s245, 8
      %s247 = scalar_lea.vmem %s0, %s246
      %s248 = smul.u32 32, %s17
      %s249 = smul.u32 32, %s17
      %p250 = scmp.lt.s32.totalorder %s249, 63
      %s251 = scalar_select %p250, %s249, 63
      %s252 = smul.addr %s251, 8
      %s253 = scalar_lea.vmem %s6, %s252
      %s254 = smul.u32 32, %s17
      %v256 = vld [vmem:[%s247] sm:$0xff]
      %v257 = vld [vmem:[%s247 + $0x8] sm:$0xff]
      %v258 = vld [vmem:[%s247 + $0x10] sm:$0xff]
      %v259 = vld [vmem:[%s247 + $0x18] sm:$0xff]
      %v260 = vld [vmem:[%s247 + $0x20] sm:$0xff]
      %v261 = vld [vmem:[%s247 + $0x28] sm:$0xff]
      %v262 = vld [vmem:[%s247 + $0x30] sm:$0xff]
      %v263 = vld [vmem:[%s247 + $0x38] sm:$0xff]
      %v264 = vld [vmem:[%s247 + $0x40] sm:$0xff]
      %v265 = vld [vmem:[%s247 + $0x48] sm:$0xff]
      %v266 = vld [vmem:[%s247 + $0x50] sm:$0xff]
      %v267 = vld [vmem:[%s247 + $0x58] sm:$0xff]
      %v268 = vld [vmem:[%s247 + $0x60] sm:$0xff]
      %v269 = vld [vmem:[%s247 + $0x68] sm:$0xff]
      %v270 = vld [vmem:[%s247 + $0x70] sm:$0xff]
      %v271 = vld [vmem:[%s247 + $0x78] sm:$0xff]
      %v272 = vld [vmem:[%s247 + $0x80] sm:$0xff]
      %v273 = vld [vmem:[%s247 + $0x88] sm:$0xff]
      %v274 = vld [vmem:[%s247 + $0x90] sm:$0xff]
      %v275 = vld [vmem:[%s247 + $0x98] sm:$0xff]
      %v276 = vld [vmem:[%s247 + $0xa0] sm:$0xff]
      %v277 = vld [vmem:[%s247 + $0xa8] sm:$0xff]
      %v278 = vld [vmem:[%s247 + $0xb0] sm:$0xff]
      %v279 = vld [vmem:[%s247 + $0xb8] sm:$0xff]
      %v280 = vld [vmem:[%s247 + $0xc0] sm:$0xff]
      %v281 = vld [vmem:[%s247 + $0xc8] sm:$0xff]
      %v282 = vld [vmem:[%s247 + $0xd0] sm:$0xff]
      %v283 = vld [vmem:[%s247 + $0xd8] sm:$0xff]
      %v284 = vld [vmem:[%s247 + $0xe0] sm:$0xff]
      %v285 = vld [vmem:[%s247 + $0xe8] sm:$0xff]
      %v286 = vld [vmem:[%s247 + $0xf0] sm:$0xff]
      %v287 = vld [vmem:[%s247 + $0xf8] sm:$0xff]
      %v288 = vpack.c.bf16 %v257, %v256
      %v289 = vpack.c.bf16 %v259, %v258
      %v290 = vpack.c.bf16 %v261, %v260
      %v291 = vpack.c.bf16 %v263, %v262
      %v292 = vpack.c.bf16 %v265, %v264
      %v293 = vpack.c.bf16 %v267, %v266
      %v294 = vpack.c.bf16 %v269, %v268
      %v295 = vpack.c.bf16 %v271, %v270
      %v296 = vpack.c.bf16 %v273, %v272
      %v297 = vpack.c.bf16 %v275, %v274
      %v298 = vpack.c.bf16 %v277, %v276
      %v299 = vpack.c.bf16 %v279, %v278
      %v300 = vpack.c.bf16 %v281, %v280
      %v301 = vpack.c.bf16 %v283, %v282
      %v302 = vpack.c.bf16 %v285, %v284
      %v303 = vpack.c.bf16 %v287, %v286
      %v304 = vld [vmem:[%s1] sm:$0xf]
      %v305 = vld [vmem:[%s1 + $0x4] sm:$0xf]
      %v306 = vld [vmem:[%s1 + $0x8] sm:$0xf]
      %v307 = vld [vmem:[%s1 + $0xc] sm:$0xf]
      %v308 = vld [vmem:[%s1 + $0x10] sm:$0xf]
      %v309 = vld [vmem:[%s1 + $0x14] sm:$0xf]
      %v310 = vld [vmem:[%s1 + $0x18] sm:$0xf]
      %v311 = vld [vmem:[%s1 + $0x1c] sm:$0xf]
      %v312 = vld [vmem:[%s4] sm:$0x1]
      %v313 = vld [vmem:[%s4 + $0x1] sm:$0x1]
      %v314 = vld [vmem:[%s4 + $0x2] sm:$0x1]
      %v315 = vlaneseq
      %v316 = vshrl.u32 %v315, 7
      %v317 = vsub.s32 0, %v316
      %v318 = vrot.slane %v312, %v317
      %v327 = vunpack.c.l.b16 %v304
      %v328 = vunpack.c.l.b16 %v305
      %v329 = vunpack.c.l.b16 %v306
      %v330 = vunpack.c.l.b16 %v307
      %v331 = vunpack.c.l.b16 %v308
      %v332 = vunpack.c.l.b16 %v309
      %v333 = vunpack.c.l.b16 %v310
      %v334 = vunpack.c.l.b16 %v311
      %v335 = vpack.c.b16 %v328, %v327
      %v336 = vpack.c.b16 %v330, %v329
      %v337 = vpack.c.b16 %v332, %v331
      %v338 = vpack.c.b16 %v334, %v333
      %vm343 = vcmask 523264
      %v345 = vsel %vm343, %v288, 0
      %v348 = vsel %vm343, %v289, 0
      %v351 = vsel %vm343, %v290, 0
      %v354 = vsel %vm343, %v291, 0
      %v357 = vsel %vm343, %v292, 0
      %v360 = vsel %vm343, %v293, 0
      %v363 = vsel %vm343, %v294, 0
      %v366 = vsel %vm343, %v295, 0
      %v369 = vsel %vm343, %v296, 0
      %v372 = vsel %vm343, %v297, 0
      %v375 = vsel %vm343, %v298, 0
      %v378 = vsel %vm343, %v299, 0
      %v381 = vsel %vm343, %v300, 0
      %v384 = vsel %vm343, %v301, 0
      %v387 = vsel %vm343, %v302, 0
      %v390 = vsel %vm343, %v303, 0
      %392 = vmatprep.subr.bf16.mxu0 0
      %393 = vmatpush1.bf16.msra.mxu0 %v335
      %394 = vmatprep.subr.bf16.mxu0 0
      %395 = vmatpush1.bf16.msra.mxu0 %v336
      %396 = vmatprep.subr.bf16.mxu0 0
      %397 = vmatpush1.bf16.msra.mxu0 %v337
      %398 = vmatprep.subr.bf16.mxu0 0
      %399 = vmatpush1.bf16.msra.mxu0 %v338
      %400 = vmatprep.subr.bf16.mxu0 0
      %401 = vmatpush1.bf16.msra.mxu0 0
      %402 = vmatprep.subr.bf16.mxu0 0
      %403 = vmatpush1.bf16.msra.mxu0 0
      %404 = vmatprep.subr.bf16.mxu0 0
      %405 = vmatpush1.bf16.msra.mxu0 0
      %406 = vmatprep.subr.bf16.mxu0 0
      %407 = vmatpush1.bf16.msra.mxu0 0
      %408 = vmatprep.subr.bf16.mxu0 0
      %409 = vmatpush1.bf16.msra.mxu0 0
      %410 = vmatprep.subr.bf16.mxu0 0
      %411 = vmatpush1.bf16.msra.mxu0 0
      %412 = vmatprep.subr.bf16.mxu0 0
      %413 = vmatpush1.bf16.msra.mxu0 0
      %414 = vmatprep.subr.bf16.mxu0 0
      %415 = vmatpush1.bf16.msra.mxu0 0
      %416 = vmatprep.subr.bf16.mxu0 0
      %417 = vmatpush1.bf16.msra.mxu0 0
      %418 = vmatprep.subr.bf16.mxu0 0
      %419 = vmatpush1.bf16.msra.mxu0 0
      %420 = vmatprep.subr.bf16.mxu0 0
      %421 = vmatpush1.bf16.msra.mxu0 0
      %422 = vmatprep.subr.bf16.mxu0 0
      %423 = vmatpush1.bf16.msra.mxu0 0
      %424 = vmatprep.mubr.bf16.mxu0 0
      %425 = vmatmul.mubr.bf16.gmra.mrb[0].mxu0 %v345
      %v426 = vpop.f32.mrb[0].mxu0
      %v427 = vadd.f32 %v318, %v426
      %v428 = vpop.f32.mrb[0].mxu0
      %v429 = vpop.f32.mrb[0].mxu0
      %v430 = vadd.f32 %v318, %v429
      %v431 = vpop.f32.mrb[0].mxu0
      %432 = vmatprep.mubr.bf16.mxu0 0
      %433 = vmatmul.mubr.bf16.gmra.mrb[0].mxu0 %v348
      %v434 = vpop.f32.mrb[0].mxu0
      %v435 = vadd.f32 %v318, %v434
      %v436 = vpop.f32.mrb[0].mxu0
      %v437 = vpop.f32.mrb[0].mxu0
      %v438 = vadd.f32 %v318, %v437
      %v439 = vpop.f32.mrb[0].mxu0
      %440 = vmatprep.mubr.bf16.mxu0 0
      %441 = vmatmul.mubr.bf16.gmra.mrb[0].mxu0 %v351
      %v442 = vpop.f32.mrb[0].mxu0
      %v443 = vadd.f32 %v318, %v442
      %v444 = vpop.f32.mrb[0].mxu0
      %v445 = vpop.f32.mrb[0].mxu0
      %v446 = vadd.f32 %v318, %v445
      %v447 = vpop.f32.mrb[0].mxu0
      %448 = vmatprep.mubr.bf16.mxu0 0
      %449 = vmatmul.mubr.bf16.gmra.mrb[0].mxu0 %v354
      %v450 = vpop.f32.mrb[0].mxu0
      %v451 = vadd.f32 %v318, %v450
      %v452 = vpop.f32.mrb[0].mxu0
      %v453 = vpop.f32.mrb[0].mxu0
      %v454 = vadd.f32 %v318, %v453
      %v455 = vpop.f32.mrb[0].mxu0
      %456 = vmatprep.mubr.bf16.mxu0 0
      %457 = vmatmul.mubr.bf16.gmra.mrb[0].mxu0 %v357
      %v458 = vpop.f32.mrb[0].mxu0
      %v459 = vadd.f32 %v318, %v458
      %v460 = vpop.f32.mrb[0].mxu0
      %v461 = vpop.f32.mrb[0].mxu0
      %v462 = vadd.f32 %v318, %v461
      %v463 = vpop.f32.mrb[0].mxu0
      %464 = vmatprep.mubr.bf16.mxu0 0
      %465 = vmatmul.mubr.bf16.gmra.mrb[0].mxu0 %v360
      %v466 = vpop.f32.mrb[0].mxu0
      %v467 = vadd.f32 %v318, %v466
      %v468 = vpop.f32.mrb[0].mxu0
      %v469 = vpop.f32.mrb[0].mxu0
      %v470 = vadd.f32 %v318, %v469
      %v471 = vpop.f32.mrb[0].mxu0
      %472 = vmatprep.mubr.bf16.mxu0 0
      %473 = vmatmul.mubr.bf16.gmra.mrb[0].mxu0 %v363
      %v474 = vpop.f32.mrb[0].mxu0
      %v475 = vadd.f32 %v318, %v474
      %v476 = vpop.f32.mrb[0].mxu0
      %v477 = vpop.f32.mrb[0].mxu0
      %v478 = vadd.f32 %v318, %v477
      %v479 = vpop.f32.mrb[0].mxu0
      %480 = vmatprep.mubr.bf16.mxu0 0
      %481 = vmatmul.mubr.bf16.gmra.mrb[0].mxu0 %v366
      %v482 = vpop.f32.mrb[0].mxu0
      %v483 = vadd.f32 %v318, %v482
      %v484 = vpop.f32.mrb[0].mxu0
      %v485 = vpop.f32.mrb[0].mxu0
      %v486 = vadd.f32 %v318, %v485
      %v487 = vpop.f32.mrb[0].mxu0
      %488 = vmatprep.mubr.bf16.mxu0 0
      %489 = vmatmul.mubr.bf16.gmra.mrb[0].mxu0 %v369
      %v490 = vpop.f32.mrb[0].mxu0
      %v491 = vadd.f32 %v318, %v490
      %v492 = vpop.f32.mrb[0].mxu0
      %v493 = vpop.f32.mrb[0].mxu0
      %v494 = vadd.f32 %v318, %v493
      %v495 = vpop.f32.mrb[0].mxu0
      %496 = vmatprep.mubr.bf16.mxu0 0
      %497 = vmatmul.mubr.bf16.gmra.mrb[0].mxu0 %v372
      %v498 = vpop.f32.mrb[0].mxu0
      %v499 = vadd.f32 %v318, %v498
      %v500 = vpop.f32.mrb[0].mxu0
      %v501 = vpop.f32.mrb[0].mxu0
      %v502 = vadd.f32 %v318, %v501
      %v503 = vpop.f32.mrb[0].mxu0
      %504 = vmatprep.mubr.bf16.mxu0 0
      %505 = vmatmul.mubr.bf16.gmra.mrb[0].mxu0 %v375
      %v506 = vpop.f32.mrb[0].mxu0
      %v507 = vadd.f32 %v318, %v506
      %v508 = vpop.f32.mrb[0].mxu0
      %v509 = vpop.f32.mrb[0].mxu0
      %v510 = vadd.f32 %v318, %v509
      %v511 = vpop.f32.mrb[0].mxu0
      %512 = vmatprep.mubr.bf16.mxu0 0
      %513 = vmatmul.mubr.bf16.gmra.mrb[0].mxu0 %v378
      %v514 = vpop.f32.mrb[0].mxu0
      %v515 = vadd.f32 %v318, %v514
      %v516 = vpop.f32.mrb[0].mxu0
      %v517 = vpop.f32.mrb[0].mxu0
      %v518 = vadd.f32 %v318, %v517
      %v519 = vpop.f32.mrb[0].mxu0
      %520 = vmatprep.mubr.bf16.mxu0 0
      %521 = vmatmul.mubr.bf16.gmra.mrb[0].mxu0 %v381
      %v522 = vpop.f32.mrb[0].mxu0
      %v523 = vadd.f32 %v318, %v522
      %v524 = vpop.f32.mrb[0].mxu0
      %v525 = vpop.f32.mrb[0].mxu0
      %v526 = vadd.f32 %v318, %v525
      %v527 = vpop.f32.mrb[0].mxu0
      %528 = vmatprep.mubr.bf16.mxu0 0
      %529 = vmatmul.mubr.bf16.gmra.mrb[0].mxu0 %v384
      %v530 = vpop.f32.mrb[0].mxu0
      %v531 = vadd.f32 %v318, %v530
      %v532 = vpop.f32.mrb[0].mxu0
      %v533 = vpop.f32.mrb[0].mxu0
      %v534 = vadd.f32 %v318, %v533
      %v535 = vpop.f32.mrb[0].mxu0
      %536 = vmatprep.mubr.bf16.mxu0 0
      %537 = vmatmul.mubr.bf16.gmra.mrb[0].mxu0 %v387
      %v538 = vpop.f32.mrb[0].mxu0
      %v539 = vadd.f32 %v318, %v538
      %v540 = vpop.f32.mrb[0].mxu0
      %v541 = vpop.f32.mrb[0].mxu0
      %v542 = vadd.f32 %v318, %v541
      %v543 = vpop.f32.mrb[0].mxu0
      %544 = vmatprep.mubr.bf16.mxu0 0
      %545 = vmatmul.mubr.bf16.gmra.mrb[0].mxu0 %v390
      %v546 = vpop.f32.mrb[0].mxu0
      %v547 = vadd.f32 %v318, %v546
      %v548 = vpop.f32.mrb[0].mxu0
      %v549 = vpop.f32.mrb[0].mxu0
      %v550 = vadd.f32 %v318, %v549
      %v551 = vpop.f32.mrb[0].mxu0
      %552 = vdwg.mxu0
      %v553 = vmax.f32 %v427, 0.0
      %v554 = vmax.f32 %v430, 0.0
      %v555 = vmax.f32 %v435, 0.0
      %v556 = vmax.f32 %v438, 0.0
      %v557 = vmax.f32 %v443, 0.0
      %v558 = vmax.f32 %v446, 0.0
      %v559 = vmax.f32 %v451, 0.0
      %v560 = vmax.f32 %v454, 0.0
      %v561 = vmax.f32 %v459, 0.0
      %v562 = vmax.f32 %v462, 0.0
      %v563 = vmax.f32 %v467, 0.0
      %v564 = vmax.f32 %v470, 0.0
      %v565 = vmax.f32 %v475, 0.0
      %v566 = vmax.f32 %v478, 0.0
      %v567 = vmax.f32 %v483, 0.0
      %v568 = vmax.f32 %v486, 0.0
      %v569 = vmax.f32 %v491, 0.0
      %v570 = vmax.f32 %v494, 0.0
      %v571 = vmax.f32 %v499, 0.0
      %v572 = vmax.f32 %v502, 0.0
      %v573 = vmax.f32 %v507, 0.0
      %v574 = vmax.f32 %v510, 0.0
      %v575 = vmax.f32 %v515, 0.0
      %v576 = vmax.f32 %v518, 0.0
      %v577 = vmax.f32 %v523, 0.0
      %v578 = vmax.f32 %v526, 0.0
      %v579 = vmax.f32 %v531, 0.0
      %v580 = vmax.f32 %v534, 0.0
      %v581 = vmax.f32 %v539, 0.0
      %v582 = vmax.f32 %v542, 0.0
      %v583 = vmax.f32 %v547, 0.0
      %v584 = vmax.f32 %v550, 0.0
      %585 = vadd.xlane.f32.xlu0 %v553
      %v586 = vpop.xlane.xlu0 %585
      %587 = vadd.xlane.f32.xlu0 %v554
      %v588 = vpop.xlane.xlu0 %587
      %589 = vadd.xlane.f32.xlu0 %v555
      %v590 = vpop.xlane.xlu0 %589
      %591 = vadd.xlane.f32.xlu0 %v556
      %v592 = vpop.xlane.xlu0 %591
      %593 = vadd.xlane.f32.xlu0 %v557
      %v594 = vpop.xlane.xlu0 %593
      %595 = vadd.xlane.f32.xlu0 %v558
      %v596 = vpop.xlane.xlu0 %595
      %597 = vadd.xlane.f32.xlu0 %v559
      %v598 = vpop.xlane.xlu0 %597
      %599 = vadd.xlane.f32.xlu0 %v560
      %v600 = vpop.xlane.xlu0 %599
      %601 = vadd.xlane.f32.xlu0 %v561
      %v602 = vpop.xlane.xlu0 %601
      %603 = vadd.xlane.f32.xlu0 %v562
      %v604 = vpop.xlane.xlu0 %603
      %605 = vadd.xlane.f32.xlu0 %v563
      %v606 = vpop.xlane.xlu0 %605
      %607 = vadd.xlane.f32.xlu0 %v564
      %v608 = vpop.xlane.xlu0 %607
      %609 = vadd.xlane.f32.xlu0 %v565
      %v610 = vpop.xlane.xlu0 %609
      %611 = vadd.xlane.f32.xlu0 %v566
      %v612 = vpop.xlane.xlu0 %611
      %613 = vadd.xlane.f32.xlu0 %v567
      %v614 = vpop.xlane.xlu0 %613
      %615 = vadd.xlane.f32.xlu0 %v568
      %v616 = vpop.xlane.xlu0 %615
      %617 = vadd.xlane.f32.xlu0 %v569
      %v618 = vpop.xlane.xlu0 %617
      %619 = vadd.xlane.f32.xlu0 %v570
      %v620 = vpop.xlane.xlu0 %619
      %621 = vadd.xlane.f32.xlu0 %v571
      %v622 = vpop.xlane.xlu0 %621
      %623 = vadd.xlane.f32.xlu0 %v572
      %v624 = vpop.xlane.xlu0 %623
      %625 = vadd.xlane.f32.xlu0 %v573
      %v626 = vpop.xlane.xlu0 %625
      %627 = vadd.xlane.f32.xlu0 %v574
      %v628 = vpop.xlane.xlu0 %627
      %629 = vadd.xlane.f32.xlu0 %v575
      %v630 = vpop.xlane.xlu0 %629
      %631 = vadd.xlane.f32.xlu0 %v576
      %v632 = vpop.xlane.xlu0 %631
      %633 = vadd.xlane.f32.xlu0 %v577
      %v634 = vpop.xlane.xlu0 %633
      %635 = vadd.xlane.f32.xlu0 %v578
      %v636 = vpop.xlane.xlu0 %635
      %637 = vadd.xlane.f32.xlu0 %v579
      %v638 = vpop.xlane.xlu0 %637
      %639 = vadd.xlane.f32.xlu0 %v580
      %v640 = vpop.xlane.xlu0 %639
      %641 = vadd.xlane.f32.xlu0 %v581
      %v642 = vpop.xlane.xlu0 %641
      %643 = vadd.xlane.f32.xlu0 %v582
      %v644 = vpop.xlane.xlu0 %643
      %645 = vadd.xlane.f32.xlu0 %v583
      %v646 = vpop.xlane.xlu0 %645
      %647 = vadd.xlane.f32.xlu0 %v584
      %v648 = vpop.xlane.xlu0 %647
      %v649 = vmul.f32 %v553, %v553
      %v650 = vmul.f32 %v554, %v554
      %v651 = vmul.f32 %v555, %v555
      %v652 = vmul.f32 %v556, %v556
      %v653 = vmul.f32 %v557, %v557
      %v654 = vmul.f32 %v558, %v558
      %v655 = vmul.f32 %v559, %v559
      %v656 = vmul.f32 %v560, %v560
      %v657 = vmul.f32 %v561, %v561
      %v658 = vmul.f32 %v562, %v562
      %v659 = vmul.f32 %v563, %v563
      %v660 = vmul.f32 %v564, %v564
      %v661 = vmul.f32 %v565, %v565
      %v662 = vmul.f32 %v566, %v566
      %v663 = vmul.f32 %v567, %v567
      %v664 = vmul.f32 %v568, %v568
      %v665 = vmul.f32 %v569, %v569
      %v666 = vmul.f32 %v570, %v570
      %v667 = vmul.f32 %v571, %v571
      %v668 = vmul.f32 %v572, %v572
      %v669 = vmul.f32 %v573, %v573
      %v670 = vmul.f32 %v574, %v574
      %v671 = vmul.f32 %v575, %v575
      %v672 = vmul.f32 %v576, %v576
      %v673 = vmul.f32 %v577, %v577
      %v674 = vmul.f32 %v578, %v578
      %v675 = vmul.f32 %v579, %v579
      %v676 = vmul.f32 %v580, %v580
      %v677 = vmul.f32 %v581, %v581
      %v678 = vmul.f32 %v582, %v582
      %v679 = vmul.f32 %v583, %v583
      %v680 = vmul.f32 %v584, %v584
      %681 = vadd.xlane.f32.xlu0 %v649
      %v682 = vpop.xlane.xlu0 %681
      %683 = vadd.xlane.f32.xlu0 %v650
      %v684 = vpop.xlane.xlu0 %683
      %685 = vadd.xlane.f32.xlu0 %v651
      %v686 = vpop.xlane.xlu0 %685
      %687 = vadd.xlane.f32.xlu0 %v652
      %v688 = vpop.xlane.xlu0 %687
      %689 = vadd.xlane.f32.xlu0 %v653
      %v690 = vpop.xlane.xlu0 %689
      %691 = vadd.xlane.f32.xlu0 %v654
      %v692 = vpop.xlane.xlu0 %691
      %693 = vadd.xlane.f32.xlu0 %v655
      %v694 = vpop.xlane.xlu0 %693
      %695 = vadd.xlane.f32.xlu0 %v656
      %v696 = vpop.xlane.xlu0 %695
      %697 = vadd.xlane.f32.xlu0 %v657
      %v698 = vpop.xlane.xlu0 %697
      %699 = vadd.xlane.f32.xlu0 %v658
      %v700 = vpop.xlane.xlu0 %699
      %701 = vadd.xlane.f32.xlu0 %v659
      %v702 = vpop.xlane.xlu0 %701
      %703 = vadd.xlane.f32.xlu0 %v660
      %v704 = vpop.xlane.xlu0 %703
      %705 = vadd.xlane.f32.xlu0 %v661
      %v706 = vpop.xlane.xlu0 %705
      %707 = vadd.xlane.f32.xlu0 %v662
      %v708 = vpop.xlane.xlu0 %707
      %709 = vadd.xlane.f32.xlu0 %v663
      %v710 = vpop.xlane.xlu0 %709
      %711 = vadd.xlane.f32.xlu0 %v664
      %v712 = vpop.xlane.xlu0 %711
      %713 = vadd.xlane.f32.xlu0 %v665
      %v714 = vpop.xlane.xlu0 %713
      %715 = vadd.xlane.f32.xlu0 %v666
      %v716 = vpop.xlane.xlu0 %715
      %717 = vadd.xlane.f32.xlu0 %v667
      %v718 = vpop.xlane.xlu0 %717
      %719 = vadd.xlane.f32.xlu0 %v668
      %v720 = vpop.xlane.xlu0 %719
      %721 = vadd.xlane.f32.xlu0 %v669
      %v722 = vpop.xlane.xlu0 %721
      %723 = vadd.xlane.f32.xlu0 %v670
      %v724 = vpop.xlane.xlu0 %723
      %725 = vadd.xlane.f32.xlu0 %v671
      %v726 = vpop.xlane.xlu0 %725
      %727 = vadd.xlane.f32.xlu0 %v672
      %v728 = vpop.xlane.xlu0 %727
      %729 = vadd.xlane.f32.xlu0 %v673
      %v730 = vpop.xlane.xlu0 %729
      %731 = vadd.xlane.f32.xlu0 %v674
      %v732 = vpop.xlane.xlu0 %731
      %733 = vadd.xlane.f32.xlu0 %v675
      %v734 = vpop.xlane.xlu0 %733
      %735 = vadd.xlane.f32.xlu0 %v676
      %v736 = vpop.xlane.xlu0 %735
      %737 = vadd.xlane.f32.xlu0 %v677
      %v738 = vpop.xlane.xlu0 %737
      %739 = vadd.xlane.f32.xlu0 %v678
      %v740 = vpop.xlane.xlu0 %739
      %741 = vadd.xlane.f32.xlu0 %v679
      %v742 = vpop.xlane.xlu0 %741
      %743 = vadd.xlane.f32.xlu0 %v680
      %v744 = vpop.xlane.xlu0 %743
      %v745 = vmul.f32 %v586, 0.015625
      %v746 = vmul.f32 %v588, 0.015625
      %v747 = vmul.f32 %v590, 0.015625
      %v748 = vmul.f32 %v592, 0.015625
      %v749 = vmul.f32 %v594, 0.015625
      %v750 = vmul.f32 %v596, 0.015625
      %v751 = vmul.f32 %v598, 0.015625
      %v752 = vmul.f32 %v600, 0.015625
      %v753 = vmul.f32 %v602, 0.015625
      %v754 = vmul.f32 %v604, 0.015625
      %v755 = vmul.f32 %v606, 0.015625
      %v756 = vmul.f32 %v608, 0.015625
      %v757 = vmul.f32 %v610, 0.015625
      %v758 = vmul.f32 %v612, 0.015625
      %v759 = vmul.f32 %v614, 0.015625
      %v760 = vmul.f32 %v616, 0.015625
      %v761 = vmul.f32 %v618, 0.015625
      %v762 = vmul.f32 %v620, 0.015625
      %v763 = vmul.f32 %v622, 0.015625
      %v764 = vmul.f32 %v624, 0.015625
      %v765 = vmul.f32 %v626, 0.015625
      %v766 = vmul.f32 %v628, 0.015625
      %v767 = vmul.f32 %v630, 0.015625
      %v768 = vmul.f32 %v632, 0.015625
      %v769 = vmul.f32 %v634, 0.015625
      %v770 = vmul.f32 %v636, 0.015625
      %v771 = vmul.f32 %v638, 0.015625
      %v772 = vmul.f32 %v640, 0.015625
      %v773 = vmul.f32 %v642, 0.015625
      %v774 = vmul.f32 %v644, 0.015625
      %v775 = vmul.f32 %v646, 0.015625
      %v776 = vmul.f32 %v648, 0.015625
      %v777 = vmul.f32 %v682, 0.015625
      %v778 = vmul.f32 %v684, 0.015625
      %v779 = vmul.f32 %v686, 0.015625
      %v780 = vmul.f32 %v688, 0.015625
      %v781 = vmul.f32 %v690, 0.015625
      %v782 = vmul.f32 %v692, 0.015625
      %v783 = vmul.f32 %v694, 0.015625
      %v784 = vmul.f32 %v696, 0.015625
      %v785 = vmul.f32 %v698, 0.015625
      %v786 = vmul.f32 %v700, 0.015625
      %v787 = vmul.f32 %v702, 0.015625
      %v788 = vmul.f32 %v704, 0.015625
      %v789 = vmul.f32 %v706, 0.015625
      %v790 = vmul.f32 %v708, 0.015625
      %v791 = vmul.f32 %v710, 0.015625
      %v792 = vmul.f32 %v712, 0.015625
      %v793 = vmul.f32 %v714, 0.015625
      %v794 = vmul.f32 %v716, 0.015625
      %v795 = vmul.f32 %v718, 0.015625
      %v796 = vmul.f32 %v720, 0.015625
      %v797 = vmul.f32 %v722, 0.015625
      %v798 = vmul.f32 %v724, 0.015625
      %v799 = vmul.f32 %v726, 0.015625
      %v800 = vmul.f32 %v728, 0.015625
      %v801 = vmul.f32 %v730, 0.015625
      %v802 = vmul.f32 %v732, 0.015625
      %v803 = vmul.f32 %v734, 0.015625
      %v804 = vmul.f32 %v736, 0.015625
      %v805 = vmul.f32 %v738, 0.015625
      %v806 = vmul.f32 %v740, 0.015625
      %v807 = vmul.f32 %v742, 0.015625
      %v808 = vmul.f32 %v744, 0.015625
      %v809 = vmul.f32 %v745, %v745
      %v810 = vmul.f32 %v746, %v746
      %v811 = vmul.f32 %v747, %v747
      %v812 = vmul.f32 %v748, %v748
      %v813 = vmul.f32 %v749, %v749
      %v814 = vmul.f32 %v750, %v750
      %v815 = vmul.f32 %v751, %v751
      %v816 = vmul.f32 %v752, %v752
      %v817 = vmul.f32 %v753, %v753
      %v818 = vmul.f32 %v754, %v754
      %v819 = vmul.f32 %v755, %v755
      %v820 = vmul.f32 %v756, %v756
      %v821 = vmul.f32 %v757, %v757
      %v822 = vmul.f32 %v758, %v758
      %v823 = vmul.f32 %v759, %v759
      %v824 = vmul.f32 %v760, %v760
      %v825 = vmul.f32 %v761, %v761
      %v826 = vmul.f32 %v762, %v762
      %v827 = vmul.f32 %v763, %v763
      %v828 = vmul.f32 %v764, %v764
      %v829 = vmul.f32 %v765, %v765
      %v830 = vmul.f32 %v766, %v766
      %v831 = vmul.f32 %v767, %v767
      %v832 = vmul.f32 %v768, %v768
      %v833 = vmul.f32 %v769, %v769
      %v834 = vmul.f32 %v770, %v770
      %v835 = vmul.f32 %v771, %v771
      %v836 = vmul.f32 %v772, %v772
      %v837 = vmul.f32 %v773, %v773
      %v838 = vmul.f32 %v774, %v774
      %v839 = vmul.f32 %v775, %v775
      %v840 = vmul.f32 %v776, %v776
      %v841 = vsub.f32 %v777, %v809
      %v842 = vsub.f32 %v778, %v810
      %v843 = vsub.f32 %v779, %v811
      %v844 = vsub.f32 %v780, %v812
      %v845 = vsub.f32 %v781, %v813
      %v846 = vsub.f32 %v782, %v814
      %v847 = vsub.f32 %v783, %v815
      %v848 = vsub.f32 %v784, %v816
      %v849 = vsub.f32 %v785, %v817
      %v850 = vsub.f32 %v786, %v818
      %v851 = vsub.f32 %v787, %v819
      %v852 = vsub.f32 %v788, %v820
      %v853 = vsub.f32 %v789, %v821
      %v854 = vsub.f32 %v790, %v822
      %v855 = vsub.f32 %v791, %v823
      %v856 = vsub.f32 %v792, %v824
      %v857 = vsub.f32 %v793, %v825
      %v858 = vsub.f32 %v794, %v826
      %v859 = vsub.f32 %v795, %v827
      %v860 = vsub.f32 %v796, %v828
      %v861 = vsub.f32 %v797, %v829
      %v862 = vsub.f32 %v798, %v830
      %v863 = vsub.f32 %v799, %v831
      %v864 = vsub.f32 %v800, %v832
      %v865 = vsub.f32 %v801, %v833
      %v866 = vsub.f32 %v802, %v834
      %v867 = vsub.f32 %v803, %v835
      %v868 = vsub.f32 %v804, %v836
      %v869 = vsub.f32 %v805, %v837
      %v870 = vsub.f32 %v806, %v838
      %v871 = vsub.f32 %v807, %v839
      %v872 = vsub.f32 %v808, %v840
      %v873 = vmax.f32 %v841, 0.0
      %v874 = vmax.f32 %v842, 0.0
      %v875 = vmax.f32 %v843, 0.0
      %v876 = vmax.f32 %v844, 0.0
      %v877 = vmax.f32 %v845, 0.0
      %v878 = vmax.f32 %v846, 0.0
      %v879 = vmax.f32 %v847, 0.0
      %v880 = vmax.f32 %v848, 0.0
      %v881 = vmax.f32 %v849, 0.0
      %v882 = vmax.f32 %v850, 0.0
      %v883 = vmax.f32 %v851, 0.0
      %v884 = vmax.f32 %v852, 0.0
      %v885 = vmax.f32 %v853, 0.0
      %v886 = vmax.f32 %v854, 0.0
      %v887 = vmax.f32 %v855, 0.0
      %v888 = vmax.f32 %v856, 0.0
      %v889 = vmax.f32 %v857, 0.0
      %v890 = vmax.f32 %v858, 0.0
      %v891 = vmax.f32 %v859, 0.0
      %v892 = vmax.f32 %v860, 0.0
      %v893 = vmax.f32 %v861, 0.0
      %v894 = vmax.f32 %v862, 0.0
      %v895 = vmax.f32 %v863, 0.0
      %v896 = vmax.f32 %v864, 0.0
      %v897 = vmax.f32 %v865, 0.0
      %v898 = vmax.f32 %v866, 0.0
      %v899 = vmax.f32 %v867, 0.0
      %v900 = vmax.f32 %v868, 0.0
      %v901 = vmax.f32 %v869, 0.0
      %v902 = vmax.f32 %v870, 0.0
      %v903 = vmax.f32 %v871, 0.0
      %v904 = vmax.f32 %v872, 0.0
      %v905 = vsub.f32 %v553, %v745
      %v906 = vsub.f32 %v554, %v746
      %v907 = vsub.f32 %v555, %v747
      %v908 = vsub.f32 %v556, %v748
      %v909 = vsub.f32 %v557, %v749
      %v910 = vsub.f32 %v558, %v750
      %v911 = vsub.f32 %v559, %v751
      %v912 = vsub.f32 %v560, %v752
      %v913 = vsub.f32 %v561, %v753
      %v914 = vsub.f32 %v562, %v754
      %v915 = vsub.f32 %v563, %v755
      %v916 = vsub.f32 %v564, %v756
      %v917 = vsub.f32 %v565, %v757
      %v918 = vsub.f32 %v566, %v758
      %v919 = vsub.f32 %v567, %v759
      %v920 = vsub.f32 %v568, %v760
      %v921 = vsub.f32 %v569, %v761
      %v922 = vsub.f32 %v570, %v762
      %v923 = vsub.f32 %v571, %v763
      %v924 = vsub.f32 %v572, %v764
      %v925 = vsub.f32 %v573, %v765
      %v926 = vsub.f32 %v574, %v766
      %v927 = vsub.f32 %v575, %v767
      %v928 = vsub.f32 %v576, %v768
      %v929 = vsub.f32 %v577, %v769
      %v930 = vsub.f32 %v578, %v770
      %v931 = vsub.f32 %v579, %v771
      %v932 = vsub.f32 %v580, %v772
      %v933 = vsub.f32 %v581, %v773
      %v934 = vsub.f32 %v582, %v774
      %v935 = vsub.f32 %v583, %v775
      %v936 = vsub.f32 %v584, %v776
      %v937 = vadd.f32 %v873, 1e-05
      %v938 = vadd.f32 %v874, 1e-05
      %v939 = vadd.f32 %v875, 1e-05
      %v940 = vadd.f32 %v876, 1e-05
      %v941 = vadd.f32 %v877, 1e-05
      %v942 = vadd.f32 %v878, 1e-05
      %v943 = vadd.f32 %v879, 1e-05
      %v944 = vadd.f32 %v880, 1e-05
      %v945 = vadd.f32 %v881, 1e-05
      %v946 = vadd.f32 %v882, 1e-05
      %v947 = vadd.f32 %v883, 1e-05
      %v948 = vadd.f32 %v884, 1e-05
      %v949 = vadd.f32 %v885, 1e-05
      %v950 = vadd.f32 %v886, 1e-05
      %v951 = vadd.f32 %v887, 1e-05
      %v952 = vadd.f32 %v888, 1e-05
      %v953 = vadd.f32 %v889, 1e-05
      %v954 = vadd.f32 %v890, 1e-05
      %v955 = vadd.f32 %v891, 1e-05
      %v956 = vadd.f32 %v892, 1e-05
      %v957 = vadd.f32 %v893, 1e-05
      %v958 = vadd.f32 %v894, 1e-05
      %v959 = vadd.f32 %v895, 1e-05
      %v960 = vadd.f32 %v896, 1e-05
      %v961 = vadd.f32 %v897, 1e-05
      %v962 = vadd.f32 %v898, 1e-05
      %v963 = vadd.f32 %v899, 1e-05
      %v964 = vadd.f32 %v900, 1e-05
      %v965 = vadd.f32 %v901, 1e-05
      %v966 = vadd.f32 %v902, 1e-05
      %v967 = vadd.f32 %v903, 1e-05
      %v968 = vadd.f32 %v904, 1e-05
      %v969 = vrsqrt.pop %v937
      %v970 = vrsqrt.pop %v938
      %v971 = vrsqrt.pop %v939
      %v972 = vrsqrt.pop %v940
      %v973 = vrsqrt.pop %v941
      %v974 = vrsqrt.pop %v942
      %v975 = vrsqrt.pop %v943
      %v976 = vrsqrt.pop %v944
      %v977 = vrsqrt.pop %v945
      %v978 = vrsqrt.pop %v946
      %v979 = vrsqrt.pop %v947
      %v980 = vrsqrt.pop %v948
      %v981 = vrsqrt.pop %v949
      %v982 = vrsqrt.pop %v950
      %v983 = vrsqrt.pop %v951
      %v984 = vrsqrt.pop %v952
      %v985 = vrsqrt.pop %v953
      %v986 = vrsqrt.pop %v954
      %v987 = vrsqrt.pop %v955
      %v988 = vrsqrt.pop %v956
      %v989 = vrsqrt.pop %v957
      %v990 = vrsqrt.pop %v958
      %v991 = vrsqrt.pop %v959
      %v992 = vrsqrt.pop %v960
      %v993 = vrsqrt.pop %v961
      %v994 = vrsqrt.pop %v962
      %v995 = vrsqrt.pop %v963
      %v996 = vrsqrt.pop %v964
      %v997 = vrsqrt.pop %v965
      %v998 = vrsqrt.pop %v966
      %v999 = vrsqrt.pop %v967
      %v1000 = vrsqrt.pop %v968
      %v1001 = vmul.f32 %v905, %v969
      %v1002 = vmul.f32 %v906, %v970
      %v1003 = vmul.f32 %v907, %v971
      %v1004 = vmul.f32 %v908, %v972
      %v1005 = vmul.f32 %v909, %v973
      %v1006 = vmul.f32 %v910, %v974
      %v1007 = vmul.f32 %v911, %v975
      %v1008 = vmul.f32 %v912, %v976
      %v1009 = vmul.f32 %v913, %v977
      %v1010 = vmul.f32 %v914, %v978
      %v1011 = vmul.f32 %v915, %v979
      %v1012 = vmul.f32 %v916, %v980
      %v1013 = vmul.f32 %v917, %v981
      %v1014 = vmul.f32 %v918, %v982
      %v1015 = vmul.f32 %v919, %v983
      %v1016 = vmul.f32 %v920, %v984
      %v1017 = vmul.f32 %v921, %v985
      %v1018 = vmul.f32 %v922, %v986
      %v1019 = vmul.f32 %v923, %v987
      %v1020 = vmul.f32 %v924, %v988
      %v1021 = vmul.f32 %v925, %v989
      %v1022 = vmul.f32 %v926, %v990
      %v1023 = vmul.f32 %v927, %v991
      %v1024 = vmul.f32 %v928, %v992
      %v1025 = vmul.f32 %v929, %v993
      %v1026 = vmul.f32 %v930, %v994
      %v1027 = vmul.f32 %v931, %v995
      %v1028 = vmul.f32 %v932, %v996
      %v1029 = vmul.f32 %v933, %v997
      %v1030 = vmul.f32 %v934, %v998
      %v1031 = vmul.f32 %v935, %v999
      %v1032 = vmul.f32 %v936, %v1000
      %v1033 = vlaneseq
      %v1034 = vshrl.u32 %v1033, 7
      %v1035 = vsub.s32 0, %v1034
      %v1036 = vrot.slane %v313, %v1035
      %v1037 = vmul.f32 %v1001, %v1036
      %v1038 = vmul.f32 %v1002, %v1036
      %v1039 = vmul.f32 %v1003, %v1036
      %v1040 = vmul.f32 %v1004, %v1036
      %v1041 = vmul.f32 %v1005, %v1036
      %v1042 = vmul.f32 %v1006, %v1036
      %v1043 = vmul.f32 %v1007, %v1036
      %v1044 = vmul.f32 %v1008, %v1036
      %v1045 = vmul.f32 %v1009, %v1036
      %v1046 = vmul.f32 %v1010, %v1036
      %v1047 = vmul.f32 %v1011, %v1036
      %v1048 = vmul.f32 %v1012, %v1036
      %v1049 = vmul.f32 %v1013, %v1036
      %v1050 = vmul.f32 %v1014, %v1036
      %v1051 = vmul.f32 %v1015, %v1036
      %v1052 = vmul.f32 %v1016, %v1036
      %v1053 = vmul.f32 %v1017, %v1036
      %v1054 = vmul.f32 %v1018, %v1036
      %v1055 = vmul.f32 %v1019, %v1036
      %v1056 = vmul.f32 %v1020, %v1036
      %v1057 = vmul.f32 %v1021, %v1036
      %v1058 = vmul.f32 %v1022, %v1036
      %v1059 = vmul.f32 %v1023, %v1036
      %v1060 = vmul.f32 %v1024, %v1036
      %v1061 = vmul.f32 %v1025, %v1036
      %v1062 = vmul.f32 %v1026, %v1036
      %v1063 = vmul.f32 %v1027, %v1036
      %v1064 = vmul.f32 %v1028, %v1036
      %v1065 = vmul.f32 %v1029, %v1036
      %v1066 = vmul.f32 %v1030, %v1036
      %v1067 = vmul.f32 %v1031, %v1036
      %v1068 = vmul.f32 %v1032, %v1036
      %v1069 = vlaneseq
      %v1070 = vshrl.u32 %v1069, 7
      %v1071 = vsub.s32 0, %v1070
      %v1072 = vrot.slane %v314, %v1071
      %v1073 = vadd.f32 %v1037, %v1072
      %v1074 = vadd.f32 %v1038, %v1072
      %v1075 = vadd.f32 %v1039, %v1072
      %v1076 = vadd.f32 %v1040, %v1072
      %v1077 = vadd.f32 %v1041, %v1072
      %v1078 = vadd.f32 %v1042, %v1072
      %v1079 = vadd.f32 %v1043, %v1072
      %v1080 = vadd.f32 %v1044, %v1072
      %v1081 = vadd.f32 %v1045, %v1072
      %v1082 = vadd.f32 %v1046, %v1072
      %v1083 = vadd.f32 %v1047, %v1072
      %v1084 = vadd.f32 %v1048, %v1072
      %v1085 = vadd.f32 %v1049, %v1072
      %v1086 = vadd.f32 %v1050, %v1072
      %v1087 = vadd.f32 %v1051, %v1072
      %v1088 = vadd.f32 %v1052, %v1072
      %v1089 = vadd.f32 %v1053, %v1072
      %v1090 = vadd.f32 %v1054, %v1072
      %v1091 = vadd.f32 %v1055, %v1072
      %v1092 = vadd.f32 %v1056, %v1072
      %v1093 = vadd.f32 %v1057, %v1072
      %v1094 = vadd.f32 %v1058, %v1072
      %v1095 = vadd.f32 %v1059, %v1072
      %v1096 = vadd.f32 %v1060, %v1072
      %v1097 = vadd.f32 %v1061, %v1072
      %v1098 = vadd.f32 %v1062, %v1072
      %v1099 = vadd.f32 %v1063, %v1072
      %v1100 = vadd.f32 %v1064, %v1072
      %v1101 = vadd.f32 %v1065, %v1072
      %v1102 = vadd.f32 %v1066, %v1072
      %v1103 = vadd.f32 %v1067, %v1072
      %v1104 = vadd.f32 %v1068, %v1072
      %v1105 = vpack.c.bf16 %v1074, %v1073
      %v1106 = vpack.c.bf16 %v1076, %v1075
      %v1107 = vpack.c.bf16 %v1078, %v1077
      %v1108 = vpack.c.bf16 %v1080, %v1079
      %v1109 = vpack.c.bf16 %v1082, %v1081
      %v1110 = vpack.c.bf16 %v1084, %v1083
      %v1111 = vpack.c.bf16 %v1086, %v1085
      %v1112 = vpack.c.bf16 %v1088, %v1087
      %v1113 = vpack.c.bf16 %v1090, %v1089
      %v1114 = vpack.c.bf16 %v1092, %v1091
      %v1115 = vpack.c.bf16 %v1094, %v1093
      %v1116 = vpack.c.bf16 %v1096, %v1095
      %v1117 = vpack.c.bf16 %v1098, %v1097
      %v1118 = vpack.c.bf16 %v1100, %v1099
      %v1119 = vpack.c.bf16 %v1102, %v1101
      %v1120 = vpack.c.bf16 %v1104, %v1103
      %v1121 = vld [vmem:[%s2] sm:$0xf]
      %v1122 = vld [vmem:[%s2 + $0x4] sm:$0xf]
      %v1123 = vld [vmem:[%s2 + $0x8] sm:$0xf]
      %v1124 = vld [vmem:[%s2 + $0xc] sm:$0xf]
      %v1125 = vld [vmem:[%s2 + $0x10] sm:$0xf]
      %v1126 = vld [vmem:[%s2 + $0x14] sm:$0xf]
      %v1127 = vld [vmem:[%s2 + $0x18] sm:$0xf]
      %v1128 = vld [vmem:[%s2 + $0x1c] sm:$0xf]
      %v1129 = vld [vmem:[%s2 + $0x20] sm:$0xf]
      %v1130 = vld [vmem:[%s2 + $0x24] sm:$0xf]
      %v1131 = vld [vmem:[%s2 + $0x28] sm:$0xf]
      %v1132 = vld [vmem:[%s2 + $0x2c] sm:$0xf]
      %v1133 = vld [vmem:[%s2 + $0x30] sm:$0xf]
      %v1134 = vld [vmem:[%s2 + $0x34] sm:$0xf]
      %v1135 = vld [vmem:[%s2 + $0x38] sm:$0xf]
      %v1136 = vld [vmem:[%s2 + $0x3c] sm:$0xf]
      %v1137 = vld [vmem:[%s4 + $0x3] sm:$0x1]
      %v1138 = vld [vmem:[%s4 + $0x4] sm:$0x1]
      %v1139 = vld [vmem:[%s4 + $0x5] sm:$0x1]
      %v1140 = vlaneseq
      %v1141 = vshrl.u32 %v1140, 7
      %v1142 = vsub.s32 0, %v1141
      %v1143 = vrot.slane %v1137, %v1142
      %v1160 = vunpack.c.l.b16 %v1121
      %v1161 = vunpack.c.l.b16 %v1122
      %v1162 = vunpack.c.l.b16 %v1123
      %v1163 = vunpack.c.l.b16 %v1124
      %v1164 = vunpack.c.l.b16 %v1125
      %v1165 = vunpack.c.l.b16 %v1126
      %v1166 = vunpack.c.l.b16 %v1127
      %v1167 = vunpack.c.l.b16 %v1128
      %v1168 = vunpack.c.l.b16 %v1129
      %v1169 = vunpack.c.l.b16 %v1130
      %v1170 = vunpack.c.l.b16 %v1131
      %v1171 = vunpack.c.l.b16 %v1132
      %v1172 = vunpack.c.l.b16 %v1133
      %v1173 = vunpack.c.l.b16 %v1134
      %v1174 = vunpack.c.l.b16 %v1135
      %v1175 = vunpack.c.l.b16 %v1136
      %v1176 = vpack.c.b16 %v1161, %v1160
      %v1177 = vpack.c.b16 %v1163, %v1162
      %v1178 = vpack.c.b16 %v1165, %v1164
      %v1179 = vpack.c.b16 %v1167, %v1166
      %v1180 = vpack.c.b16 %v1169, %v1168
      %v1181 = vpack.c.b16 %v1171, %v1170
      %v1182 = vpack.c.b16 %v1173, %v1172
      %v1183 = vpack.c.b16 %v1175, %v1174
      %1192 = vmatprep.subr.bf16.mxu0 0
      %1193 = vmatpush1.bf16.msra.mxu0 %v1176
      %1194 = vmatprep.subr.bf16.mxu0 0
      %1195 = vmatpush1.bf16.msra.mxu0 %v1177
      %1196 = vmatprep.subr.bf16.mxu0 0
      %1197 = vmatpush1.bf16.msra.mxu0 %v1178
      %1198 = vmatprep.subr.bf16.mxu0 0
      %1199 = vmatpush1.bf16.msra.mxu0 %v1179
      %1200 = vmatprep.subr.bf16.mxu0 0
      %1201 = vmatpush1.bf16.msra.mxu0 %v1180
      %1202 = vmatprep.subr.bf16.mxu0 0
      %1203 = vmatpush1.bf16.msra.mxu0 %v1181
      %1204 = vmatprep.subr.bf16.mxu0 0
      %1205 = vmatpush1.bf16.msra.mxu0 %v1182
      %1206 = vmatprep.subr.bf16.mxu0 0
      %1207 = vmatpush1.bf16.msra.mxu0 %v1183
      %1208 = vmatprep.subr.bf16.mxu0 0
      %1209 = vmatpush1.bf16.msra.mxu0 0
      %1210 = vmatprep.subr.bf16.mxu0 0
      %1211 = vmatpush1.bf16.msra.mxu0 0
      %1212 = vmatprep.subr.bf16.mxu0 0
      %1213 = vmatpush1.bf16.msra.mxu0 0
      %1214 = vmatprep.subr.bf16.mxu0 0
      %1215 = vmatpush1.bf16.msra.mxu0 0
      %1216 = vmatprep.subr.bf16.mxu0 0
      %1217 = vmatpush1.bf16.msra.mxu0 0
      %1218 = vmatprep.subr.bf16.mxu0 0
      %1219 = vmatpush1.bf16.msra.mxu0 0
      %1220 = vmatprep.subr.bf16.mxu0 0
      %1221 = vmatpush1.bf16.msra.mxu0 0
      %1222 = vmatprep.subr.bf16.mxu0 0
      %1223 = vmatpush1.bf16.msra.mxu0 0
      %1224 = vmatprep.mubr.bf16.mxu0 0
      %1225 = vmatmul.mubr.bf16.gmra.mrb[0].mxu0 %v1105
      %v1226 = vpop.f32.mrb[0].mxu0
      %v1227 = vadd.f32 %v1143, %v1226
      %v1228 = vpop.f32.mrb[0].mxu0
      %v1229 = vpop.f32.mrb[0].mxu0
      %v1230 = vadd.f32 %v1143, %v1229
      %v1231 = vpop.f32.mrb[0].mxu0
      %1232 = vmatprep.mubr.bf16.mxu0 0
      %1233 = vmatmul.mubr.bf16.gmra.mrb[0].mxu0 %v1106
      %v1234 = vpop.f32.mrb[0].mxu0
      %v1235 = vadd.f32 %v1143, %v1234
      %v1236 = vpop.f32.mrb[0].mxu0
      %v1237 = vpop.f32.mrb[0].mxu0
      %v1238 = vadd.f32 %v1143, %v1237
      %v1239 = vpop.f32.mrb[0].mxu0
      %1240 = vmatprep.mubr.bf16.mxu0 0
      %1241 = vmatmul.mubr.bf16.gmra.mrb[0].mxu0 %v1107
      %v1242 = vpop.f32.mrb[0].mxu0
      %v1243 = vadd.f32 %v1143, %v1242
      %v1244 = vpop.f32.mrb[0].mxu0
      %v1245 = vpop.f32.mrb[0].mxu0
      %v1246 = vadd.f32 %v1143, %v1245
      %v1247 = vpop.f32.mrb[0].mxu0
      %1248 = vmatprep.mubr.bf16.mxu0 0
      %1249 = vmatmul.mubr.bf16.gmra.mrb[0].mxu0 %v1108
      %v1250 = vpop.f32.mrb[0].mxu0
      %v1251 = vadd.f32 %v1143, %v1250
      %v1252 = vpop.f32.mrb[0].mxu0
      %v1253 = vpop.f32.mrb[0].mxu0
      %v1254 = vadd.f32 %v1143, %v1253
      %v1255 = vpop.f32.mrb[0].mxu0
      %1256 = vmatprep.mubr.bf16.mxu0 0
      %1257 = vmatmul.mubr.bf16.gmra.mrb[0].mxu0 %v1109
      %v1258 = vpop.f32.mrb[0].mxu0
      %v1259 = vadd.f32 %v1143, %v1258
      %v1260 = vpop.f32.mrb[0].mxu0
      %v1261 = vpop.f32.mrb[0].mxu0
      %v1262 = vadd.f32 %v1143, %v1261
      %v1263 = vpop.f32.mrb[0].mxu0
      %1264 = vmatprep.mubr.bf16.mxu0 0
      %1265 = vmatmul.mubr.bf16.gmra.mrb[0].mxu0 %v1110
      %v1266 = vpop.f32.mrb[0].mxu0
      %v1267 = vadd.f32 %v1143, %v1266
      %v1268 = vpop.f32.mrb[0].mxu0
      %v1269 = vpop.f32.mrb[0].mxu0
      %v1270 = vadd.f32 %v1143, %v1269
      %v1271 = vpop.f32.mrb[0].mxu0
      %1272 = vmatprep.mubr.bf16.mxu0 0
      %1273 = vmatmul.mubr.bf16.gmra.mrb[0].mxu0 %v1111
      %v1274 = vpop.f32.mrb[0].mxu0
      %v1275 = vadd.f32 %v1143, %v1274
      %v1276 = vpop.f32.mrb[0].mxu0
      %v1277 = vpop.f32.mrb[0].mxu0
      %v1278 = vadd.f32 %v1143, %v1277
      %v1279 = vpop.f32.mrb[0].mxu0
      %1280 = vmatprep.mubr.bf16.mxu0 0
      %1281 = vmatmul.mubr.bf16.gmra.mrb[0].mxu0 %v1112
      %v1282 = vpop.f32.mrb[0].mxu0
      %v1283 = vadd.f32 %v1143, %v1282
      %v1284 = vpop.f32.mrb[0].mxu0
      %v1285 = vpop.f32.mrb[0].mxu0
      %v1286 = vadd.f32 %v1143, %v1285
      %v1287 = vpop.f32.mrb[0].mxu0
      %1288 = vmatprep.mubr.bf16.mxu0 0
      %1289 = vmatmul.mubr.bf16.gmra.mrb[0].mxu0 %v1113
      %v1290 = vpop.f32.mrb[0].mxu0
      %v1291 = vadd.f32 %v1143, %v1290
      %v1292 = vpop.f32.mrb[0].mxu0
      %v1293 = vpop.f32.mrb[0].mxu0
      %v1294 = vadd.f32 %v1143, %v1293
      %v1295 = vpop.f32.mrb[0].mxu0
      %1296 = vmatprep.mubr.bf16.mxu0 0
      %1297 = vmatmul.mubr.bf16.gmra.mrb[0].mxu0 %v1114
      %v1298 = vpop.f32.mrb[0].mxu0
      %v1299 = vadd.f32 %v1143, %v1298
      %v1300 = vpop.f32.mrb[0].mxu0
      %v1301 = vpop.f32.mrb[0].mxu0
      %v1302 = vadd.f32 %v1143, %v1301
      %v1303 = vpop.f32.mrb[0].mxu0
      %1304 = vmatprep.mubr.bf16.mxu0 0
      %1305 = vmatmul.mubr.bf16.gmra.mrb[0].mxu0 %v1115
      %v1306 = vpop.f32.mrb[0].mxu0
      %v1307 = vadd.f32 %v1143, %v1306
      %v1308 = vpop.f32.mrb[0].mxu0
      %v1309 = vpop.f32.mrb[0].mxu0
      %v1310 = vadd.f32 %v1143, %v1309
      %v1311 = vpop.f32.mrb[0].mxu0
      %1312 = vmatprep.mubr.bf16.mxu0 0
      %1313 = vmatmul.mubr.bf16.gmra.mrb[0].mxu0 %v1116
      %v1314 = vpop.f32.mrb[0].mxu0
      %v1315 = vadd.f32 %v1143, %v1314
      %v1316 = vpop.f32.mrb[0].mxu0
      %v1317 = vpop.f32.mrb[0].mxu0
      %v1318 = vadd.f32 %v1143, %v1317
      %v1319 = vpop.f32.mrb[0].mxu0
      %1320 = vmatprep.mubr.bf16.mxu0 0
      %1321 = vmatmul.mubr.bf16.gmra.mrb[0].mxu0 %v1117
      %v1322 = vpop.f32.mrb[0].mxu0
      %v1323 = vadd.f32 %v1143, %v1322
      %v1324 = vpop.f32.mrb[0].mxu0
      %v1325 = vpop.f32.mrb[0].mxu0
      %v1326 = vadd.f32 %v1143, %v1325
      %v1327 = vpop.f32.mrb[0].mxu0
      %1328 = vmatprep.mubr.bf16.mxu0 0
      %1329 = vmatmul.mubr.bf16.gmra.mrb[0].mxu0 %v1118
      %v1330 = vpop.f32.mrb[0].mxu0
      %v1331 = vadd.f32 %v1143, %v1330
      %v1332 = vpop.f32.mrb[0].mxu0
      %v1333 = vpop.f32.mrb[0].mxu0
      %v1334 = vadd.f32 %v1143, %v1333
      %v1335 = vpop.f32.mrb[0].mxu0
      %1336 = vmatprep.mubr.bf16.mxu0 0
      %1337 = vmatmul.mubr.bf16.gmra.mrb[0].mxu0 %v1119
      %v1338 = vpop.f32.mrb[0].mxu0
      %v1339 = vadd.f32 %v1143, %v1338
      %v1340 = vpop.f32.mrb[0].mxu0
      %v1341 = vpop.f32.mrb[0].mxu0
      %v1342 = vadd.f32 %v1143, %v1341
      %v1343 = vpop.f32.mrb[0].mxu0
      %1344 = vmatprep.mubr.bf16.mxu0 0
      %1345 = vmatmul.mubr.bf16.gmra.mrb[0].mxu0 %v1120
      %v1346 = vpop.f32.mrb[0].mxu0
      %v1347 = vadd.f32 %v1143, %v1346
      %v1348 = vpop.f32.mrb[0].mxu0
      %v1349 = vpop.f32.mrb[0].mxu0
      %v1350 = vadd.f32 %v1143, %v1349
      %v1351 = vpop.f32.mrb[0].mxu0
      %1352 = vdwg.mxu0
      %v1353 = vmax.f32 %v1227, 0.0
      %v1354 = vmax.f32 %v1230, 0.0
      %v1355 = vmax.f32 %v1235, 0.0
      %v1356 = vmax.f32 %v1238, 0.0
      %v1357 = vmax.f32 %v1243, 0.0
      %v1358 = vmax.f32 %v1246, 0.0
      %v1359 = vmax.f32 %v1251, 0.0
      %v1360 = vmax.f32 %v1254, 0.0
      %v1361 = vmax.f32 %v1259, 0.0
      %v1362 = vmax.f32 %v1262, 0.0
      %v1363 = vmax.f32 %v1267, 0.0
      %v1364 = vmax.f32 %v1270, 0.0
      %v1365 = vmax.f32 %v1275, 0.0
      %v1366 = vmax.f32 %v1278, 0.0
      %v1367 = vmax.f32 %v1283, 0.0
      %v1368 = vmax.f32 %v1286, 0.0
      %v1369 = vmax.f32 %v1291, 0.0
      %v1370 = vmax.f32 %v1294, 0.0
      %v1371 = vmax.f32 %v1299, 0.0
      %v1372 = vmax.f32 %v1302, 0.0
      %v1373 = vmax.f32 %v1307, 0.0
      %v1374 = vmax.f32 %v1310, 0.0
      %v1375 = vmax.f32 %v1315, 0.0
      %v1376 = vmax.f32 %v1318, 0.0
      %v1377 = vmax.f32 %v1323, 0.0
      %v1378 = vmax.f32 %v1326, 0.0
      %v1379 = vmax.f32 %v1331, 0.0
      %v1380 = vmax.f32 %v1334, 0.0
      %v1381 = vmax.f32 %v1339, 0.0
      %v1382 = vmax.f32 %v1342, 0.0
      %v1383 = vmax.f32 %v1347, 0.0
      %v1384 = vmax.f32 %v1350, 0.0
      %1385 = vadd.xlane.f32.xlu0 %v1353
      %v1386 = vpop.xlane.xlu0 %1385
      %1387 = vadd.xlane.f32.xlu0 %v1354
      %v1388 = vpop.xlane.xlu0 %1387
      %1389 = vadd.xlane.f32.xlu0 %v1355
      %v1390 = vpop.xlane.xlu0 %1389
      %1391 = vadd.xlane.f32.xlu0 %v1356
      %v1392 = vpop.xlane.xlu0 %1391
      %1393 = vadd.xlane.f32.xlu0 %v1357
      %v1394 = vpop.xlane.xlu0 %1393
      %1395 = vadd.xlane.f32.xlu0 %v1358
      %v1396 = vpop.xlane.xlu0 %1395
      %1397 = vadd.xlane.f32.xlu0 %v1359
      %v1398 = vpop.xlane.xlu0 %1397
      %1399 = vadd.xlane.f32.xlu0 %v1360
      %v1400 = vpop.xlane.xlu0 %1399
      %1401 = vadd.xlane.f32.xlu0 %v1361
      %v1402 = vpop.xlane.xlu0 %1401
      %1403 = vadd.xlane.f32.xlu0 %v1362
      %v1404 = vpop.xlane.xlu0 %1403
      %1405 = vadd.xlane.f32.xlu0 %v1363
      %v1406 = vpop.xlane.xlu0 %1405
      %1407 = vadd.xlane.f32.xlu0 %v1364
      %v1408 = vpop.xlane.xlu0 %1407
      %1409 = vadd.xlane.f32.xlu0 %v1365
      %v1410 = vpop.xlane.xlu0 %1409
      %1411 = vadd.xlane.f32.xlu0 %v1366
      %v1412 = vpop.xlane.xlu0 %1411
      %1413 = vadd.xlane.f32.xlu0 %v1367
      %v1414 = vpop.xlane.xlu0 %1413
      %1415 = vadd.xlane.f32.xlu0 %v1368
      %v1416 = vpop.xlane.xlu0 %1415
      %1417 = vadd.xlane.f32.xlu0 %v1369
      %v1418 = vpop.xlane.xlu0 %1417
      %1419 = vadd.xlane.f32.xlu0 %v1370
      %v1420 = vpop.xlane.xlu0 %1419
      %1421 = vadd.xlane.f32.xlu0 %v1371
      %v1422 = vpop.xlane.xlu0 %1421
      %1423 = vadd.xlane.f32.xlu0 %v1372
      %v1424 = vpop.xlane.xlu0 %1423
      %1425 = vadd.xlane.f32.xlu0 %v1373
      %v1426 = vpop.xlane.xlu0 %1425
      %1427 = vadd.xlane.f32.xlu0 %v1374
      %v1428 = vpop.xlane.xlu0 %1427
      %1429 = vadd.xlane.f32.xlu0 %v1375
      %v1430 = vpop.xlane.xlu0 %1429
      %1431 = vadd.xlane.f32.xlu0 %v1376
      %v1432 = vpop.xlane.xlu0 %1431
      %1433 = vadd.xlane.f32.xlu0 %v1377
      %v1434 = vpop.xlane.xlu0 %1433
      %1435 = vadd.xlane.f32.xlu0 %v1378
      %v1436 = vpop.xlane.xlu0 %1435
      %1437 = vadd.xlane.f32.xlu0 %v1379
      %v1438 = vpop.xlane.xlu0 %1437
      %1439 = vadd.xlane.f32.xlu0 %v1380
      %v1440 = vpop.xlane.xlu0 %1439
      %1441 = vadd.xlane.f32.xlu0 %v1381
      %v1442 = vpop.xlane.xlu0 %1441
      %1443 = vadd.xlane.f32.xlu0 %v1382
      %v1444 = vpop.xlane.xlu0 %1443
      %1445 = vadd.xlane.f32.xlu0 %v1383
      %v1446 = vpop.xlane.xlu0 %1445
      %1447 = vadd.xlane.f32.xlu0 %v1384
      %v1448 = vpop.xlane.xlu0 %1447
      %v1449 = vmul.f32 %v1353, %v1353
      %v1450 = vmul.f32 %v1354, %v1354
      %v1451 = vmul.f32 %v1355, %v1355
      %v1452 = vmul.f32 %v1356, %v1356
      %v1453 = vmul.f32 %v1357, %v1357
      %v1454 = vmul.f32 %v1358, %v1358
      %v1455 = vmul.f32 %v1359, %v1359
      %v1456 = vmul.f32 %v1360, %v1360
      %v1457 = vmul.f32 %v1361, %v1361
      %v1458 = vmul.f32 %v1362, %v1362
      %v1459 = vmul.f32 %v1363, %v1363
      %v1460 = vmul.f32 %v1364, %v1364
      %v1461 = vmul.f32 %v1365, %v1365
      %v1462 = vmul.f32 %v1366, %v1366
      %v1463 = vmul.f32 %v1367, %v1367
      %v1464 = vmul.f32 %v1368, %v1368
      %v1465 = vmul.f32 %v1369, %v1369
      %v1466 = vmul.f32 %v1370, %v1370
      %v1467 = vmul.f32 %v1371, %v1371
      %v1468 = vmul.f32 %v1372, %v1372
      %v1469 = vmul.f32 %v1373, %v1373
      %v1470 = vmul.f32 %v1374, %v1374
      %v1471 = vmul.f32 %v1375, %v1375
      %v1472 = vmul.f32 %v1376, %v1376
      %v1473 = vmul.f32 %v1377, %v1377
      %v1474 = vmul.f32 %v1378, %v1378
      %v1475 = vmul.f32 %v1379, %v1379
      %v1476 = vmul.f32 %v1380, %v1380
      %v1477 = vmul.f32 %v1381, %v1381
      %v1478 = vmul.f32 %v1382, %v1382
      %v1479 = vmul.f32 %v1383, %v1383
      %v1480 = vmul.f32 %v1384, %v1384
      %1481 = vadd.xlane.f32.xlu0 %v1449
      %v1482 = vpop.xlane.xlu0 %1481
      %1483 = vadd.xlane.f32.xlu0 %v1450
      %v1484 = vpop.xlane.xlu0 %1483
      %1485 = vadd.xlane.f32.xlu0 %v1451
      %v1486 = vpop.xlane.xlu0 %1485
      %1487 = vadd.xlane.f32.xlu0 %v1452
      %v1488 = vpop.xlane.xlu0 %1487
      %1489 = vadd.xlane.f32.xlu0 %v1453
      %v1490 = vpop.xlane.xlu0 %1489
      %1491 = vadd.xlane.f32.xlu0 %v1454
      %v1492 = vpop.xlane.xlu0 %1491
      %1493 = vadd.xlane.f32.xlu0 %v1455
      %v1494 = vpop.xlane.xlu0 %1493
      %1495 = vadd.xlane.f32.xlu0 %v1456
      %v1496 = vpop.xlane.xlu0 %1495
      %1497 = vadd.xlane.f32.xlu0 %v1457
      %v1498 = vpop.xlane.xlu0 %1497
      %1499 = vadd.xlane.f32.xlu0 %v1458
      %v1500 = vpop.xlane.xlu0 %1499
      %1501 = vadd.xlane.f32.xlu0 %v1459
      %v1502 = vpop.xlane.xlu0 %1501
      %1503 = vadd.xlane.f32.xlu0 %v1460
      %v1504 = vpop.xlane.xlu0 %1503
      %1505 = vadd.xlane.f32.xlu0 %v1461
      %v1506 = vpop.xlane.xlu0 %1505
      %1507 = vadd.xlane.f32.xlu0 %v1462
      %v1508 = vpop.xlane.xlu0 %1507
      %1509 = vadd.xlane.f32.xlu0 %v1463
      %v1510 = vpop.xlane.xlu0 %1509
      %1511 = vadd.xlane.f32.xlu0 %v1464
      %v1512 = vpop.xlane.xlu0 %1511
      %1513 = vadd.xlane.f32.xlu0 %v1465
      %v1514 = vpop.xlane.xlu0 %1513
      %1515 = vadd.xlane.f32.xlu0 %v1466
      %v1516 = vpop.xlane.xlu0 %1515
      %1517 = vadd.xlane.f32.xlu0 %v1467
      %v1518 = vpop.xlane.xlu0 %1517
      %1519 = vadd.xlane.f32.xlu0 %v1468
      %v1520 = vpop.xlane.xlu0 %1519
      %1521 = vadd.xlane.f32.xlu0 %v1469
      %v1522 = vpop.xlane.xlu0 %1521
      %1523 = vadd.xlane.f32.xlu0 %v1470
      %v1524 = vpop.xlane.xlu0 %1523
      %1525 = vadd.xlane.f32.xlu0 %v1471
      %v1526 = vpop.xlane.xlu0 %1525
      %1527 = vadd.xlane.f32.xlu0 %v1472
      %v1528 = vpop.xlane.xlu0 %1527
      %1529 = vadd.xlane.f32.xlu0 %v1473
      %v1530 = vpop.xlane.xlu0 %1529
      %1531 = vadd.xlane.f32.xlu0 %v1474
      %v1532 = vpop.xlane.xlu0 %1531
      %1533 = vadd.xlane.f32.xlu0 %v1475
      %v1534 = vpop.xlane.xlu0 %1533
      %1535 = vadd.xlane.f32.xlu0 %v1476
      %v1536 = vpop.xlane.xlu0 %1535
      %1537 = vadd.xlane.f32.xlu0 %v1477
      %v1538 = vpop.xlane.xlu0 %1537
      %1539 = vadd.xlane.f32.xlu0 %v1478
      %v1540 = vpop.xlane.xlu0 %1539
      %1541 = vadd.xlane.f32.xlu0 %v1479
      %v1542 = vpop.xlane.xlu0 %1541
      %1543 = vadd.xlane.f32.xlu0 %v1480
      %v1544 = vpop.xlane.xlu0 %1543
      %v1545 = vmul.f32 %v1386, 0.015625
      %v1546 = vmul.f32 %v1388, 0.015625
      %v1547 = vmul.f32 %v1390, 0.015625
      %v1548 = vmul.f32 %v1392, 0.015625
      %v1549 = vmul.f32 %v1394, 0.015625
      %v1550 = vmul.f32 %v1396, 0.015625
      %v1551 = vmul.f32 %v1398, 0.015625
      %v1552 = vmul.f32 %v1400, 0.015625
      %v1553 = vmul.f32 %v1402, 0.015625
      %v1554 = vmul.f32 %v1404, 0.015625
      %v1555 = vmul.f32 %v1406, 0.015625
      %v1556 = vmul.f32 %v1408, 0.015625
      %v1557 = vmul.f32 %v1410, 0.015625
      %v1558 = vmul.f32 %v1412, 0.015625
      %v1559 = vmul.f32 %v1414, 0.015625
      %v1560 = vmul.f32 %v1416, 0.015625
      %v1561 = vmul.f32 %v1418, 0.015625
      %v1562 = vmul.f32 %v1420, 0.015625
      %v1563 = vmul.f32 %v1422, 0.015625
      %v1564 = vmul.f32 %v1424, 0.015625
      %v1565 = vmul.f32 %v1426, 0.015625
      %v1566 = vmul.f32 %v1428, 0.015625
      %v1567 = vmul.f32 %v1430, 0.015625
      %v1568 = vmul.f32 %v1432, 0.015625
      %v1569 = vmul.f32 %v1434, 0.015625
      %v1570 = vmul.f32 %v1436, 0.015625
      %v1571 = vmul.f32 %v1438, 0.015625
      %v1572 = vmul.f32 %v1440, 0.015625
      %v1573 = vmul.f32 %v1442, 0.015625
      %v1574 = vmul.f32 %v1444, 0.015625
      %v1575 = vmul.f32 %v1446, 0.015625
      %v1576 = vmul.f32 %v1448, 0.015625
      %v1577 = vmul.f32 %v1482, 0.015625
      %v1578 = vmul.f32 %v1484, 0.015625
      %v1579 = vmul.f32 %v1486, 0.015625
      %v1580 = vmul.f32 %v1488, 0.015625
      %v1581 = vmul.f32 %v1490, 0.015625
      %v1582 = vmul.f32 %v1492, 0.015625
      %v1583 = vmul.f32 %v1494, 0.015625
      %v1584 = vmul.f32 %v1496, 0.015625
      %v1585 = vmul.f32 %v1498, 0.015625
      %v1586 = vmul.f32 %v1500, 0.015625
      %v1587 = vmul.f32 %v1502, 0.015625
      %v1588 = vmul.f32 %v1504, 0.015625
      %v1589 = vmul.f32 %v1506, 0.015625
      %v1590 = vmul.f32 %v1508, 0.015625
      %v1591 = vmul.f32 %v1510, 0.015625
      %v1592 = vmul.f32 %v1512, 0.015625
      %v1593 = vmul.f32 %v1514, 0.015625
      %v1594 = vmul.f32 %v1516, 0.015625
      %v1595 = vmul.f32 %v1518, 0.015625
      %v1596 = vmul.f32 %v1520, 0.015625
      %v1597 = vmul.f32 %v1522, 0.015625
      %v1598 = vmul.f32 %v1524, 0.015625
      %v1599 = vmul.f32 %v1526, 0.015625
      %v1600 = vmul.f32 %v1528, 0.015625
      %v1601 = vmul.f32 %v1530, 0.015625
      %v1602 = vmul.f32 %v1532, 0.015625
      %v1603 = vmul.f32 %v1534, 0.015625
      %v1604 = vmul.f32 %v1536, 0.015625
      %v1605 = vmul.f32 %v1538, 0.015625
      %v1606 = vmul.f32 %v1540, 0.015625
      %v1607 = vmul.f32 %v1542, 0.015625
      %v1608 = vmul.f32 %v1544, 0.015625
      %v1609 = vmul.f32 %v1545, %v1545
      %v1610 = vmul.f32 %v1546, %v1546
      %v1611 = vmul.f32 %v1547, %v1547
      %v1612 = vmul.f32 %v1548, %v1548
      %v1613 = vmul.f32 %v1549, %v1549
      %v1614 = vmul.f32 %v1550, %v1550
      %v1615 = vmul.f32 %v1551, %v1551
      %v1616 = vmul.f32 %v1552, %v1552
      %v1617 = vmul.f32 %v1553, %v1553
      %v1618 = vmul.f32 %v1554, %v1554
      %v1619 = vmul.f32 %v1555, %v1555
      %v1620 = vmul.f32 %v1556, %v1556
      %v1621 = vmul.f32 %v1557, %v1557
      %v1622 = vmul.f32 %v1558, %v1558
      %v1623 = vmul.f32 %v1559, %v1559
      %v1624 = vmul.f32 %v1560, %v1560
      %v1625 = vmul.f32 %v1561, %v1561
      %v1626 = vmul.f32 %v1562, %v1562
      %v1627 = vmul.f32 %v1563, %v1563
      %v1628 = vmul.f32 %v1564, %v1564
      %v1629 = vmul.f32 %v1565, %v1565
      %v1630 = vmul.f32 %v1566, %v1566
      %v1631 = vmul.f32 %v1567, %v1567
      %v1632 = vmul.f32 %v1568, %v1568
      %v1633 = vmul.f32 %v1569, %v1569
      %v1634 = vmul.f32 %v1570, %v1570
      %v1635 = vmul.f32 %v1571, %v1571
      %v1636 = vmul.f32 %v1572, %v1572
      %v1637 = vmul.f32 %v1573, %v1573
      %v1638 = vmul.f32 %v1574, %v1574
      %v1639 = vmul.f32 %v1575, %v1575
      %v1640 = vmul.f32 %v1576, %v1576
      %v1641 = vsub.f32 %v1577, %v1609
      %v1642 = vsub.f32 %v1578, %v1610
      %v1643 = vsub.f32 %v1579, %v1611
      %v1644 = vsub.f32 %v1580, %v1612
      %v1645 = vsub.f32 %v1581, %v1613
      %v1646 = vsub.f32 %v1582, %v1614
      %v1647 = vsub.f32 %v1583, %v1615
      %v1648 = vsub.f32 %v1584, %v1616
      %v1649 = vsub.f32 %v1585, %v1617
      %v1650 = vsub.f32 %v1586, %v1618
      %v1651 = vsub.f32 %v1587, %v1619
      %v1652 = vsub.f32 %v1588, %v1620
      %v1653 = vsub.f32 %v1589, %v1621
      %v1654 = vsub.f32 %v1590, %v1622
      %v1655 = vsub.f32 %v1591, %v1623
      %v1656 = vsub.f32 %v1592, %v1624
      %v1657 = vsub.f32 %v1593, %v1625
      %v1658 = vsub.f32 %v1594, %v1626
      %v1659 = vsub.f32 %v1595, %v1627
      %v1660 = vsub.f32 %v1596, %v1628
      %v1661 = vsub.f32 %v1597, %v1629
      %v1662 = vsub.f32 %v1598, %v1630
      %v1663 = vsub.f32 %v1599, %v1631
      %v1664 = vsub.f32 %v1600, %v1632
      %v1665 = vsub.f32 %v1601, %v1633
      %v1666 = vsub.f32 %v1602, %v1634
      %v1667 = vsub.f32 %v1603, %v1635
      %v1668 = vsub.f32 %v1604, %v1636
      %v1669 = vsub.f32 %v1605, %v1637
      %v1670 = vsub.f32 %v1606, %v1638
      %v1671 = vsub.f32 %v1607, %v1639
      %v1672 = vsub.f32 %v1608, %v1640
      %v1673 = vmax.f32 %v1641, 0.0
      %v1674 = vmax.f32 %v1642, 0.0
      %v1675 = vmax.f32 %v1643, 0.0
      %v1676 = vmax.f32 %v1644, 0.0
      %v1677 = vmax.f32 %v1645, 0.0
      %v1678 = vmax.f32 %v1646, 0.0
      %v1679 = vmax.f32 %v1647, 0.0
      %v1680 = vmax.f32 %v1648, 0.0
      %v1681 = vmax.f32 %v1649, 0.0
      %v1682 = vmax.f32 %v1650, 0.0
      %v1683 = vmax.f32 %v1651, 0.0
      %v1684 = vmax.f32 %v1652, 0.0
      %v1685 = vmax.f32 %v1653, 0.0
      %v1686 = vmax.f32 %v1654, 0.0
      %v1687 = vmax.f32 %v1655, 0.0
      %v1688 = vmax.f32 %v1656, 0.0
      %v1689 = vmax.f32 %v1657, 0.0
      %v1690 = vmax.f32 %v1658, 0.0
      %v1691 = vmax.f32 %v1659, 0.0
      %v1692 = vmax.f32 %v1660, 0.0
      %v1693 = vmax.f32 %v1661, 0.0
      %v1694 = vmax.f32 %v1662, 0.0
      %v1695 = vmax.f32 %v1663, 0.0
      %v1696 = vmax.f32 %v1664, 0.0
      %v1697 = vmax.f32 %v1665, 0.0
      %v1698 = vmax.f32 %v1666, 0.0
      %v1699 = vmax.f32 %v1667, 0.0
      %v1700 = vmax.f32 %v1668, 0.0
      %v1701 = vmax.f32 %v1669, 0.0
      %v1702 = vmax.f32 %v1670, 0.0
      %v1703 = vmax.f32 %v1671, 0.0
      %v1704 = vmax.f32 %v1672, 0.0
      %v1705 = vsub.f32 %v1353, %v1545
      %v1706 = vsub.f32 %v1354, %v1546
      %v1707 = vsub.f32 %v1355, %v1547
      %v1708 = vsub.f32 %v1356, %v1548
      %v1709 = vsub.f32 %v1357, %v1549
      %v1710 = vsub.f32 %v1358, %v1550
      %v1711 = vsub.f32 %v1359, %v1551
      %v1712 = vsub.f32 %v1360, %v1552
      %v1713 = vsub.f32 %v1361, %v1553
      %v1714 = vsub.f32 %v1362, %v1554
      %v1715 = vsub.f32 %v1363, %v1555
      %v1716 = vsub.f32 %v1364, %v1556
      %v1717 = vsub.f32 %v1365, %v1557
      %v1718 = vsub.f32 %v1366, %v1558
      %v1719 = vsub.f32 %v1367, %v1559
      %v1720 = vsub.f32 %v1368, %v1560
      %v1721 = vsub.f32 %v1369, %v1561
      %v1722 = vsub.f32 %v1370, %v1562
      %v1723 = vsub.f32 %v1371, %v1563
      %v1724 = vsub.f32 %v1372, %v1564
      %v1725 = vsub.f32 %v1373, %v1565
      %v1726 = vsub.f32 %v1374, %v1566
      %v1727 = vsub.f32 %v1375, %v1567
      %v1728 = vsub.f32 %v1376, %v1568
      %v1729 = vsub.f32 %v1377, %v1569
      %v1730 = vsub.f32 %v1378, %v1570
      %v1731 = vsub.f32 %v1379, %v1571
      %v1732 = vsub.f32 %v1380, %v1572
      %v1733 = vsub.f32 %v1381, %v1573
      %v1734 = vsub.f32 %v1382, %v1574
      %v1735 = vsub.f32 %v1383, %v1575
      %v1736 = vsub.f32 %v1384, %v1576
      %v1737 = vadd.f32 %v1673, 1e-05
      %v1738 = vadd.f32 %v1674, 1e-05
      %v1739 = vadd.f32 %v1675, 1e-05
      %v1740 = vadd.f32 %v1676, 1e-05
      %v1741 = vadd.f32 %v1677, 1e-05
      %v1742 = vadd.f32 %v1678, 1e-05
      %v1743 = vadd.f32 %v1679, 1e-05
      %v1744 = vadd.f32 %v1680, 1e-05
      %v1745 = vadd.f32 %v1681, 1e-05
      %v1746 = vadd.f32 %v1682, 1e-05
      %v1747 = vadd.f32 %v1683, 1e-05
      %v1748 = vadd.f32 %v1684, 1e-05
      %v1749 = vadd.f32 %v1685, 1e-05
      %v1750 = vadd.f32 %v1686, 1e-05
      %v1751 = vadd.f32 %v1687, 1e-05
      %v1752 = vadd.f32 %v1688, 1e-05
      %v1753 = vadd.f32 %v1689, 1e-05
      %v1754 = vadd.f32 %v1690, 1e-05
      %v1755 = vadd.f32 %v1691, 1e-05
      %v1756 = vadd.f32 %v1692, 1e-05
      %v1757 = vadd.f32 %v1693, 1e-05
      %v1758 = vadd.f32 %v1694, 1e-05
      %v1759 = vadd.f32 %v1695, 1e-05
      %v1760 = vadd.f32 %v1696, 1e-05
      %v1761 = vadd.f32 %v1697, 1e-05
      %v1762 = vadd.f32 %v1698, 1e-05
      %v1763 = vadd.f32 %v1699, 1e-05
      %v1764 = vadd.f32 %v1700, 1e-05
      %v1765 = vadd.f32 %v1701, 1e-05
      %v1766 = vadd.f32 %v1702, 1e-05
      %v1767 = vadd.f32 %v1703, 1e-05
      %v1768 = vadd.f32 %v1704, 1e-05
      %v1769 = vrsqrt.pop %v1737
      %v1770 = vrsqrt.pop %v1738
      %v1771 = vrsqrt.pop %v1739
      %v1772 = vrsqrt.pop %v1740
      %v1773 = vrsqrt.pop %v1741
      %v1774 = vrsqrt.pop %v1742
      %v1775 = vrsqrt.pop %v1743
      %v1776 = vrsqrt.pop %v1744
      %v1777 = vrsqrt.pop %v1745
      %v1778 = vrsqrt.pop %v1746
      %v1779 = vrsqrt.pop %v1747
      %v1780 = vrsqrt.pop %v1748
      %v1781 = vrsqrt.pop %v1749
      %v1782 = vrsqrt.pop %v1750
      %v1783 = vrsqrt.pop %v1751
      %v1784 = vrsqrt.pop %v1752
      %v1785 = vrsqrt.pop %v1753
      %v1786 = vrsqrt.pop %v1754
      %v1787 = vrsqrt.pop %v1755
      %v1788 = vrsqrt.pop %v1756
      %v1789 = vrsqrt.pop %v1757
      %v1790 = vrsqrt.pop %v1758
      %v1791 = vrsqrt.pop %v1759
      %v1792 = vrsqrt.pop %v1760
      %v1793 = vrsqrt.pop %v1761
      %v1794 = vrsqrt.pop %v1762
      %v1795 = vrsqrt.pop %v1763
      %v1796 = vrsqrt.pop %v1764
      %v1797 = vrsqrt.pop %v1765
      %v1798 = vrsqrt.pop %v1766
      %v1799 = vrsqrt.pop %v1767
      %v1800 = vrsqrt.pop %v1768
      %v1801 = vmul.f32 %v1705, %v1769
      %v1802 = vmul.f32 %v1706, %v1770
      %v1803 = vmul.f32 %v1707, %v1771
      %v1804 = vmul.f32 %v1708, %v1772
      %v1805 = vmul.f32 %v1709, %v1773
      %v1806 = vmul.f32 %v1710, %v1774
      %v1807 = vmul.f32 %v1711, %v1775
      %v1808 = vmul.f32 %v1712, %v1776
      %v1809 = vmul.f32 %v1713, %v1777
      %v1810 = vmul.f32 %v1714, %v1778
      %v1811 = vmul.f32 %v1715, %v1779
      %v1812 = vmul.f32 %v1716, %v1780
      %v1813 = vmul.f32 %v1717, %v1781
      %v1814 = vmul.f32 %v1718, %v1782
      %v1815 = vmul.f32 %v1719, %v1783
      %v1816 = vmul.f32 %v1720, %v1784
      %v1817 = vmul.f32 %v1721, %v1785
      %v1818 = vmul.f32 %v1722, %v1786
      %v1819 = vmul.f32 %v1723, %v1787
      %v1820 = vmul.f32 %v1724, %v1788
      %v1821 = vmul.f32 %v1725, %v1789
      %v1822 = vmul.f32 %v1726, %v1790
      %v1823 = vmul.f32 %v1727, %v1791
      %v1824 = vmul.f32 %v1728, %v1792
      %v1825 = vmul.f32 %v1729, %v1793
      %v1826 = vmul.f32 %v1730, %v1794
      %v1827 = vmul.f32 %v1731, %v1795
      %v1828 = vmul.f32 %v1732, %v1796
      %v1829 = vmul.f32 %v1733, %v1797
      %v1830 = vmul.f32 %v1734, %v1798
      %v1831 = vmul.f32 %v1735, %v1799
      %v1832 = vmul.f32 %v1736, %v1800
      %v1833 = vlaneseq
      %v1834 = vshrl.u32 %v1833, 7
      %v1835 = vsub.s32 0, %v1834
      %v1836 = vrot.slane %v1138, %v1835
      %v1837 = vmul.f32 %v1801, %v1836
      %v1838 = vmul.f32 %v1802, %v1836
      %v1839 = vmul.f32 %v1803, %v1836
      %v1840 = vmul.f32 %v1804, %v1836
      %v1841 = vmul.f32 %v1805, %v1836
      %v1842 = vmul.f32 %v1806, %v1836
      %v1843 = vmul.f32 %v1807, %v1836
      %v1844 = vmul.f32 %v1808, %v1836
      %v1845 = vmul.f32 %v1809, %v1836
      %v1846 = vmul.f32 %v1810, %v1836
      %v1847 = vmul.f32 %v1811, %v1836
      %v1848 = vmul.f32 %v1812, %v1836
      %v1849 = vmul.f32 %v1813, %v1836
      %v1850 = vmul.f32 %v1814, %v1836
      %v1851 = vmul.f32 %v1815, %v1836
      %v1852 = vmul.f32 %v1816, %v1836
      %v1853 = vmul.f32 %v1817, %v1836
      %v1854 = vmul.f32 %v1818, %v1836
      %v1855 = vmul.f32 %v1819, %v1836
      %v1856 = vmul.f32 %v1820, %v1836
      %v1857 = vmul.f32 %v1821, %v1836
      %v1858 = vmul.f32 %v1822, %v1836
      %v1859 = vmul.f32 %v1823, %v1836
      %v1860 = vmul.f32 %v1824, %v1836
      %v1861 = vmul.f32 %v1825, %v1836
      %v1862 = vmul.f32 %v1826, %v1836
      %v1863 = vmul.f32 %v1827, %v1836
      %v1864 = vmul.f32 %v1828, %v1836
      %v1865 = vmul.f32 %v1829, %v1836
      %v1866 = vmul.f32 %v1830, %v1836
      %v1867 = vmul.f32 %v1831, %v1836
      %v1868 = vmul.f32 %v1832, %v1836
      %v1869 = vlaneseq
      %v1870 = vshrl.u32 %v1869, 7
      %v1871 = vsub.s32 0, %v1870
      %v1872 = vrot.slane %v1139, %v1871
      %v1873 = vadd.f32 %v1837, %v1872
      %v1874 = vadd.f32 %v1838, %v1872
      %v1875 = vadd.f32 %v1839, %v1872
      %v1876 = vadd.f32 %v1840, %v1872
      %v1877 = vadd.f32 %v1841, %v1872
      %v1878 = vadd.f32 %v1842, %v1872
      %v1879 = vadd.f32 %v1843, %v1872
      %v1880 = vadd.f32 %v1844, %v1872
      %v1881 = vadd.f32 %v1845, %v1872
      %v1882 = vadd.f32 %v1846, %v1872
      %v1883 = vadd.f32 %v1847, %v1872
      %v1884 = vadd.f32 %v1848, %v1872
      %v1885 = vadd.f32 %v1849, %v1872
      %v1886 = vadd.f32 %v1850, %v1872
      %v1887 = vadd.f32 %v1851, %v1872
      %v1888 = vadd.f32 %v1852, %v1872
      %v1889 = vadd.f32 %v1853, %v1872
      %v1890 = vadd.f32 %v1854, %v1872
      %v1891 = vadd.f32 %v1855, %v1872
      %v1892 = vadd.f32 %v1856, %v1872
      %v1893 = vadd.f32 %v1857, %v1872
      %v1894 = vadd.f32 %v1858, %v1872
      %v1895 = vadd.f32 %v1859, %v1872
      %v1896 = vadd.f32 %v1860, %v1872
      %v1897 = vadd.f32 %v1861, %v1872
      %v1898 = vadd.f32 %v1862, %v1872
      %v1899 = vadd.f32 %v1863, %v1872
      %v1900 = vadd.f32 %v1864, %v1872
      %v1901 = vadd.f32 %v1865, %v1872
      %v1902 = vadd.f32 %v1866, %v1872
      %v1903 = vadd.f32 %v1867, %v1872
      %v1904 = vadd.f32 %v1868, %v1872
      %v1905 = vpack.c.bf16 %v1874, %v1873
      %v1906 = vpack.c.bf16 %v1876, %v1875
      %v1907 = vpack.c.bf16 %v1878, %v1877
      %v1908 = vpack.c.bf16 %v1880, %v1879
      %v1909 = vpack.c.bf16 %v1882, %v1881
      %v1910 = vpack.c.bf16 %v1884, %v1883
      %v1911 = vpack.c.bf16 %v1886, %v1885
      %v1912 = vpack.c.bf16 %v1888, %v1887
      %v1913 = vpack.c.bf16 %v1890, %v1889
      %v1914 = vpack.c.bf16 %v1892, %v1891
      %v1915 = vpack.c.bf16 %v1894, %v1893
      %v1916 = vpack.c.bf16 %v1896, %v1895
      %v1917 = vpack.c.bf16 %v1898, %v1897
      %v1918 = vpack.c.bf16 %v1900, %v1899
      %v1919 = vpack.c.bf16 %v1902, %v1901
      %v1920 = vpack.c.bf16 %v1904, %v1903
      %v1921 = vld [vmem:[%s3] sm:$0xf]
      %v1922 = vld [vmem:[%s3 + $0x4] sm:$0xf]
      %v1923 = vld [vmem:[%s3 + $0x8] sm:$0xf]
      %v1924 = vld [vmem:[%s3 + $0xc] sm:$0xf]
      %v1925 = vld [vmem:[%s3 + $0x10] sm:$0xf]
      %v1926 = vld [vmem:[%s3 + $0x14] sm:$0xf]
      %v1927 = vld [vmem:[%s3 + $0x18] sm:$0xf]
      %v1928 = vld [vmem:[%s3 + $0x1c] sm:$0xf]
      %v1929 = vld [vmem:[%s3 + $0x20] sm:$0xf]
      %v1930 = vld [vmem:[%s3 + $0x24] sm:$0xf]
      %v1931 = vld [vmem:[%s3 + $0x28] sm:$0xf]
      %v1932 = vld [vmem:[%s3 + $0x2c] sm:$0xf]
      %v1933 = vld [vmem:[%s3 + $0x30] sm:$0xf]
      %v1934 = vld [vmem:[%s3 + $0x34] sm:$0xf]
      %v1935 = vld [vmem:[%s3 + $0x38] sm:$0xf]
      %v1936 = vld [vmem:[%s3 + $0x3c] sm:$0xf]
      %v1937 = vld [vmem:[%s5] sm:$0x1]
      %v1939 = vlaneseq
      %v1940 = vshrl.u32 %v1939, 7
      %v1941 = vsub.s32 0, %v1940
      %v1942 = vrot.slane %v1937, %v1941
      %v1960 = vunpack.c.l.b16 %v1921
      %v1961 = vunpack.c.l.b16 %v1922
      %v1962 = vunpack.c.l.b16 %v1923
      %v1963 = vunpack.c.l.b16 %v1924
      %v1964 = vunpack.c.l.b16 %v1925
      %v1965 = vunpack.c.l.b16 %v1926
      %v1966 = vunpack.c.l.b16 %v1927
      %v1967 = vunpack.c.l.b16 %v1928
      %v1968 = vunpack.c.l.b16 %v1929
      %v1969 = vunpack.c.l.b16 %v1930
      %v1970 = vunpack.c.l.b16 %v1931
      %v1971 = vunpack.c.l.b16 %v1932
      %v1972 = vunpack.c.l.b16 %v1933
      %v1973 = vunpack.c.l.b16 %v1934
      %v1974 = vunpack.c.l.b16 %v1935
      %v1975 = vunpack.c.l.b16 %v1936
      %v1976 = vpack.c.b16 %v1961, %v1960
      %v1977 = vpack.c.b16 %v1963, %v1962
      %v1978 = vpack.c.b16 %v1965, %v1964
      %v1979 = vpack.c.b16 %v1967, %v1966
      %v1980 = vpack.c.b16 %v1969, %v1968
      %v1981 = vpack.c.b16 %v1971, %v1970
      %v1982 = vpack.c.b16 %v1973, %v1972
      %v1983 = vpack.c.b16 %v1975, %v1974
      %1992 = vmatprep.subr.bf16.mxu0 0
      %1993 = vmatpush1.bf16.msra.mxu0 %v1976
      %1994 = vmatprep.subr.bf16.mxu0 0
      %1995 = vmatpush1.bf16.msra.mxu0 %v1977
      %1996 = vmatprep.subr.bf16.mxu0 0
      %1997 = vmatpush1.bf16.msra.mxu0 %v1978
      %1998 = vmatprep.subr.bf16.mxu0 0
      %1999 = vmatpush1.bf16.msra.mxu0 %v1979
      %2000 = vmatprep.subr.bf16.mxu0 0
      %2001 = vmatpush1.bf16.msra.mxu0 %v1980
      %2002 = vmatprep.subr.bf16.mxu0 0
      %2003 = vmatpush1.bf16.msra.mxu0 %v1981
      %2004 = vmatprep.subr.bf16.mxu0 0
      %2005 = vmatpush1.bf16.msra.mxu0 %v1982
      %2006 = vmatprep.subr.bf16.mxu0 0
      %2007 = vmatpush1.bf16.msra.mxu0 %v1983
      %2008 = vmatprep.subr.bf16.mxu0 0
      %2009 = vmatpush1.bf16.msra.mxu0 0
      %2010 = vmatprep.subr.bf16.mxu0 0
      %2011 = vmatpush1.bf16.msra.mxu0 0
      %2012 = vmatprep.subr.bf16.mxu0 0
      %2013 = vmatpush1.bf16.msra.mxu0 0
      %2014 = vmatprep.subr.bf16.mxu0 0
      %2015 = vmatpush1.bf16.msra.mxu0 0
      %2016 = vmatprep.subr.bf16.mxu0 0
      %2017 = vmatpush1.bf16.msra.mxu0 0
      %2018 = vmatprep.subr.bf16.mxu0 0
      %2019 = vmatpush1.bf16.msra.mxu0 0
      %2020 = vmatprep.subr.bf16.mxu0 0
      %2021 = vmatpush1.bf16.msra.mxu0 0
      %2022 = vmatprep.subr.bf16.mxu0 0
      %2023 = vmatpush1.bf16.msra.mxu0 0
      %2024 = vmatprep.mubr.bf16.mxu0 0
      %2025 = vmatmul.mubr.bf16.gmra.mrb[0].mxu0 %v1905
      %v2026 = vpop.f32.mrb[0].mxu0
      %v2027 = vadd.f32 %v1942, %v2026
      %v2028 = vpop.f32.mrb[0].mxu0
      %v2029 = vpop.f32.mrb[0].mxu0
      %v2030 = vadd.f32 %v1942, %v2029
      %v2031 = vpop.f32.mrb[0].mxu0
      %2032 = vmatprep.mubr.bf16.mxu0 0
      %2033 = vmatmul.mubr.bf16.gmra.mrb[0].mxu0 %v1906
      %v2034 = vpop.f32.mrb[0].mxu0
      %v2035 = vadd.f32 %v1942, %v2034
      %v2036 = vpop.f32.mrb[0].mxu0
      %v2037 = vpop.f32.mrb[0].mxu0
      %v2038 = vadd.f32 %v1942, %v2037
      %v2039 = vpop.f32.mrb[0].mxu0
      %2040 = vmatprep.mubr.bf16.mxu0 0
      %2041 = vmatmul.mubr.bf16.gmra.mrb[0].mxu0 %v1907
      %v2042 = vpop.f32.mrb[0].mxu0
      %v2043 = vadd.f32 %v1942, %v2042
      %v2044 = vpop.f32.mrb[0].mxu0
      %v2045 = vpop.f32.mrb[0].mxu0
      %v2046 = vadd.f32 %v1942, %v2045
      %v2047 = vpop.f32.mrb[0].mxu0
      %2048 = vmatprep.mubr.bf16.mxu0 0
      %2049 = vmatmul.mubr.bf16.gmra.mrb[0].mxu0 %v1908
      %v2050 = vpop.f32.mrb[0].mxu0
      %v2051 = vadd.f32 %v1942, %v2050
      %v2052 = vpop.f32.mrb[0].mxu0
      %v2053 = vpop.f32.mrb[0].mxu0
      %v2054 = vadd.f32 %v1942, %v2053
      %v2055 = vpop.f32.mrb[0].mxu0
      %2056 = vmatprep.mubr.bf16.mxu0 0
      %2057 = vmatmul.mubr.bf16.gmra.mrb[0].mxu0 %v1909
      %v2058 = vpop.f32.mrb[0].mxu0
      %v2059 = vadd.f32 %v1942, %v2058
      %v2060 = vpop.f32.mrb[0].mxu0
      %v2061 = vpop.f32.mrb[0].mxu0
      %v2062 = vadd.f32 %v1942, %v2061
      %v2063 = vpop.f32.mrb[0].mxu0
      %2064 = vmatprep.mubr.bf16.mxu0 0
      %2065 = vmatmul.mubr.bf16.gmra.mrb[0].mxu0 %v1910
      %v2066 = vpop.f32.mrb[0].mxu0
      %v2067 = vadd.f32 %v1942, %v2066
      %v2068 = vpop.f32.mrb[0].mxu0
      %v2069 = vpop.f32.mrb[0].mxu0
      %v2070 = vadd.f32 %v1942, %v2069
      %v2071 = vpop.f32.mrb[0].mxu0
      %2072 = vmatprep.mubr.bf16.mxu0 0
      %2073 = vmatmul.mubr.bf16.gmra.mrb[0].mxu0 %v1911
      %v2074 = vpop.f32.mrb[0].mxu0
      %v2075 = vadd.f32 %v1942, %v2074
      %v2076 = vpop.f32.mrb[0].mxu0
      %v2077 = vpop.f32.mrb[0].mxu0
      %v2078 = vadd.f32 %v1942, %v2077
      %v2079 = vpop.f32.mrb[0].mxu0
      %2080 = vmatprep.mubr.bf16.mxu0 0
      %2081 = vmatmul.mubr.bf16.gmra.mrb[0].mxu0 %v1912
      %v2082 = vpop.f32.mrb[0].mxu0
      %v2083 = vadd.f32 %v1942, %v2082
      %v2084 = vpop.f32.mrb[0].mxu0
      %v2085 = vpop.f32.mrb[0].mxu0
      %v2086 = vadd.f32 %v1942, %v2085
      %v2087 = vpop.f32.mrb[0].mxu0
      %2088 = vmatprep.mubr.bf16.mxu0 0
      %2089 = vmatmul.mubr.bf16.gmra.mrb[0].mxu0 %v1913
      %v2090 = vpop.f32.mrb[0].mxu0
      %v2091 = vadd.f32 %v1942, %v2090
      %v2092 = vpop.f32.mrb[0].mxu0
      %v2093 = vpop.f32.mrb[0].mxu0
      %v2094 = vadd.f32 %v1942, %v2093
      %v2095 = vpop.f32.mrb[0].mxu0
      %2096 = vmatprep.mubr.bf16.mxu0 0
      %2097 = vmatmul.mubr.bf16.gmra.mrb[0].mxu0 %v1914
      %v2098 = vpop.f32.mrb[0].mxu0
      %v2099 = vadd.f32 %v1942, %v2098
      %v2100 = vpop.f32.mrb[0].mxu0
      %v2101 = vpop.f32.mrb[0].mxu0
      %v2102 = vadd.f32 %v1942, %v2101
      %v2103 = vpop.f32.mrb[0].mxu0
      %2104 = vmatprep.mubr.bf16.mxu0 0
      %2105 = vmatmul.mubr.bf16.gmra.mrb[0].mxu0 %v1915
      %v2106 = vpop.f32.mrb[0].mxu0
      %v2107 = vadd.f32 %v1942, %v2106
      %v2108 = vpop.f32.mrb[0].mxu0
      %v2109 = vpop.f32.mrb[0].mxu0
      %v2110 = vadd.f32 %v1942, %v2109
      %v2111 = vpop.f32.mrb[0].mxu0
      %2112 = vmatprep.mubr.bf16.mxu0 0
      %2113 = vmatmul.mubr.bf16.gmra.mrb[0].mxu0 %v1916
      %v2114 = vpop.f32.mrb[0].mxu0
      %v2115 = vadd.f32 %v1942, %v2114
      %v2116 = vpop.f32.mrb[0].mxu0
      %v2117 = vpop.f32.mrb[0].mxu0
      %v2118 = vadd.f32 %v1942, %v2117
      %v2119 = vpop.f32.mrb[0].mxu0
      %2120 = vmatprep.mubr.bf16.mxu0 0
      %2121 = vmatmul.mubr.bf16.gmra.mrb[0].mxu0 %v1917
      %v2122 = vpop.f32.mrb[0].mxu0
      %v2123 = vadd.f32 %v1942, %v2122
      %v2124 = vpop.f32.mrb[0].mxu0
      %v2125 = vpop.f32.mrb[0].mxu0
      %v2126 = vadd.f32 %v1942, %v2125
      %v2127 = vpop.f32.mrb[0].mxu0
      %2128 = vmatprep.mubr.bf16.mxu0 0
      %2129 = vmatmul.mubr.bf16.gmra.mrb[0].mxu0 %v1918
      %v2130 = vpop.f32.mrb[0].mxu0
      %v2131 = vadd.f32 %v1942, %v2130
      %v2132 = vpop.f32.mrb[0].mxu0
      %v2133 = vpop.f32.mrb[0].mxu0
      %v2134 = vadd.f32 %v1942, %v2133
      %v2135 = vpop.f32.mrb[0].mxu0
      %2136 = vmatprep.mubr.bf16.mxu0 0
      %2137 = vmatmul.mubr.bf16.gmra.mrb[0].mxu0 %v1919
      %v2138 = vpop.f32.mrb[0].mxu0
      %v2139 = vadd.f32 %v1942, %v2138
      %v2140 = vpop.f32.mrb[0].mxu0
      %v2141 = vpop.f32.mrb[0].mxu0
      %v2142 = vadd.f32 %v1942, %v2141
      %v2143 = vpop.f32.mrb[0].mxu0
      %2144 = vmatprep.mubr.bf16.mxu0 0
      %2145 = vmatmul.mubr.bf16.gmra.mrb[0].mxu0 %v1920
      %v2146 = vpop.f32.mrb[0].mxu0
      %v2147 = vadd.f32 %v1942, %v2146
      %v2148 = vpop.f32.mrb[0].mxu0
      %v2149 = vpop.f32.mrb[0].mxu0
      %v2150 = vadd.f32 %v1942, %v2149
      %v2151 = vpop.f32.mrb[0].mxu0
      %2152 = vdwg.mxu0
      %2153 = vst [vmem:[%s253] sm:$0xff] %v2027
      %2154 = vst [vmem:[%s253 + $0x8] sm:$0xff] %v2030
      %2155 = vst [vmem:[%s253 + $0x10] sm:$0xff] %v2035
      %2156 = vst [vmem:[%s253 + $0x18] sm:$0xff] %v2038
      %2157 = vst [vmem:[%s253 + $0x20] sm:$0xff] %v2043
      %2158 = vst [vmem:[%s253 + $0x28] sm:$0xff] %v2046
      %2159 = vst [vmem:[%s253 + $0x30] sm:$0xff] %v2051
      %2160 = vst [vmem:[%s253 + $0x38] sm:$0xff] %v2054
      %2161 = vst [vmem:[%s253 + $0x40] sm:$0xff] %v2059
      %2162 = vst [vmem:[%s253 + $0x48] sm:$0xff] %v2062
      %2163 = vst [vmem:[%s253 + $0x50] sm:$0xff] %v2067
      %2164 = vst [vmem:[%s253 + $0x58] sm:$0xff] %v2070
      %2165 = vst [vmem:[%s253 + $0x60] sm:$0xff] %v2075
      %2166 = vst [vmem:[%s253 + $0x68] sm:$0xff] %v2078
      %2167 = vst [vmem:[%s253 + $0x70] sm:$0xff] %v2083
      %2168 = vst [vmem:[%s253 + $0x78] sm:$0xff] %v2086
      %2169 = vst [vmem:[%s253 + $0x80] sm:$0xff] %v2091
      %2170 = vst [vmem:[%s253 + $0x88] sm:$0xff] %v2094
      %2171 = vst [vmem:[%s253 + $0x90] sm:$0xff] %v2099
      %2172 = vst [vmem:[%s253 + $0x98] sm:$0xff] %v2102
      %2173 = vst [vmem:[%s253 + $0xa0] sm:$0xff] %v2107
      %2174 = vst [vmem:[%s253 + $0xa8] sm:$0xff] %v2110
      %2175 = vst [vmem:[%s253 + $0xb0] sm:$0xff] %v2115
      %2176 = vst [vmem:[%s253 + $0xb8] sm:$0xff] %v2118
      %2177 = vst [vmem:[%s253 + $0xc0] sm:$0xff] %v2123
      %2178 = vst [vmem:[%s253 + $0xc8] sm:$0xff] %v2126
      %2179 = vst [vmem:[%s253 + $0xd0] sm:$0xff] %v2131
      %2180 = vst [vmem:[%s253 + $0xd8] sm:$0xff] %v2134
      %2181 = vst [vmem:[%s253 + $0xe0] sm:$0xff] %v2139
      %2182 = vst [vmem:[%s253 + $0xe8] sm:$0xff] %v2142
      %2183 = vst [vmem:[%s253 + $0xf0] sm:$0xff] %v2147
      %2184 = vst [vmem:[%s253 + $0xf8] sm:$0xff] %v2150
      %s2185 = smul.u32 32, %s17
      %p2186 = scmp.lt.s32.totalorder %s2185, 63
      %s2187 = scalar_select %p2186, %s2185, 63
      %s2188 = smul.addr %s2187, 8
      %s2189 = scalar_lea.vmem %s6, %s2188
      // Predicated region
      $region45: #{_forward.1} parent=43 // pred_check
        %p2190 = pneg %p166
      $region46: #{_forward.1} parent=43 // pred_check_branch
        %2192 = sbr.rel (%p2190) target = $region48
      $region47: #{_forward.1} parent=43 // pred_region
        %s2193 = smul.u32 32, %s17
      $region48: #{_forward.1} parent=43 // pred_fallthru
        _
    $region44: #{_forward.1} parent=5 // pred_fallthru
      _
    %p2194 = scmp.le.s32.totalorder 2, %s12
    // Predicated region
    $region49: #{_forward.1} parent=5 // pred_check
      %p2195 = pneg %p2194
    $region50: #{_forward.1} parent=5 // pred_check_branch
      %2197 = sbr.rel (%p2195) target = $region52
    $region51: #{_forward.1} parent=5 // pred_region
      %s2198 = ssub.s32 %s12, 2
      // Predicated region
      $region53: #{_forward.1} parent=51 // pred_check
        %p2199 = pneg %p172
      $region54: #{_forward.1} parent=51 // pred_check_branch
        %2201 = sbr.rel (%p2199) target = $region56
      $region55: #{_forward.1} parent=51 // pred_region
        %s2202 = smul.u32 32, %s18
        %p2203 = scmp.lt.s32.totalorder %s2202, 63
        %s2204 = scalar_select %p2203, %s2202, 63
        %s2205 = smul.addr %s2204, 8
        %s2206 = scalar_lea.vmem %s6, %s2205
      $region56: #{_forward.1} parent=51 // pred_fallthru
        _
    $region52: #{_forward.1} parent=5 // pred_fallthru
      _
  $region6: #{_forward.1} parent=0 // loop_footer
    %s16 = sadd.s32 1, %s12
  $region7: #{_forward.1} parent=0 // loop_footer_branch
    %11 = sbr.rel target = $region3
  $region8: #{_forward.1} parent=0 // loop_exit
    _

</llo_original>
